<compile_context>
chip_gen: v7x
topology: tpu7x:2x2x1
jax: 0.10.0
libtpu: 0.0.40
codegen_flags: <defaults>
</compile_context>

<pallas_src>
import math

import jax
import jax.numpy as jnp
from jax.experimental import pallas as pl
from jax.experimental.pallas import tpu as pltpu

# ----------------------------- config -------------------------------------
TOKEN_NUM = 8          # L
HEADS = 2              # H
DIM = 32               # D
GROUPS = 4
USE_CLS_TOKEN = 0
NUM_TARGETS = GROUPS + USE_CLS_TOKEN     # G: query tokens produced by the block
DIM_HEAD = DIM // HEADS                  # 16
HG = HEADS * NUM_TARGETS                 # 8   (head, group) score columns
OUT_W = NUM_TARGETS * DIM                # 128 -> exactly one lane-dense vreg row

# Packed bf16 weight slab (rows of a (PARAM_ROWS, 128) tensor); all section
# offsets are multiples of 16 so bf16 sublane tiles stay aligned.
_R_WS = 0        # rows   0: 32  fused K-proj + scaled Q.K weights (cols 0:8)
_R_WVB = 32      # rows  32: 64  V-proj pre-broadcast over (d_head, head, group)
_R_WBIG = 64     # rows  64:192  head-merge + output Linear weight
PARAM_ROWS = 192

# Small f32 bias slab (kept f32 for precision; sections 8-row aligned).
_B_BS = 0        # row 0, cols 0:8   fused score bias
_B_BVB = 8       # row 8             V bias (broadcast layout)
_B_BOT = 16      # row 16            output bias tiled over groups
BIAS_ROWS = 24


# ----------------------------- kernel --------------------------------------
def memory_block_kernel(x_ref, w_ref, b_ref, out_ref):
    l, d = TOKEN_NUM, DIM
    n = x_ref.shape[0]            # tb * L rows
    tb = n // l

    # x arrives flattened (tb*L, D) in bf16 -> MXU-native operand.
    x2 = x_ref[...].astype(jnp.bfloat16)

    Ws = w_ref[_R_WS:_R_WS + d, 0:HG]            # (32, 8)    bf16
    Wvb = w_ref[_R_WVB:_R_WVB + d, :]            # (32, 128)  bf16
    Wbig = w_ref[_R_WBIG:_R_WBIG + OUT_W, :]     # (128, 128) bf16

    bs = b_ref[_B_BS:_B_BS + 1, 0:HG]            # (1, 8)     f32
    bvb = b_ref[_B_BVB:_B_BVB + 1, :]            # (1, 128)   f32
    bo_t = b_ref[_B_BOT:_B_BOT + 1, :]           # (1, 128)   f32

    # Fused K projection + scaled q.k^T scores (q, Wq, bq, Wk, bk, scale all
    # folded into Ws/bs in the wrapper).  Column hg = head*G + group.
    s = jnp.dot(x2, Ws, preferred_element_type=jnp.float32) + bs        # (n, 8)

    # Softmax over the token axis (sublanes after a tile-aligned reshape).
    # All f32; denominator reciprocal goes to the EUP slot.
    s3 = s.reshape(tb, l, HG)
    m = jnp.max(s3, axis=1, keepdims=True)                              # (tb,1,8)
    e = jnp.exp(s3 - m)                                                 # (tb,L,8)
    denom = jnp.sum(e, axis=1, keepdims=True)                           # (tb,1,8)
    p = e * pl.reciprocal(denom, approx=True)                           # (tb,L,8)
    p2 = p.reshape(n, HG)                                               # (n, 8)

    # V projection, already broadcast over groups: lane j = dh*8 + (h*4 + g).
    vb = jnp.dot(x2, Wvb, preferred_element_type=jnp.float32) + bvb     # (n, 128)

    # Broadcast attention weights over the 16 d_head lanes with a pure lane
    # tile (VPU/XLU) -- no MXU work, unlike the old 0/1 matmul.
    pb = jnp.tile(p2, (1, DIM_HEAD))                                    # (n, 128)

    # attn @ v == elementwise product + sublane reduction over L.
    o = jnp.sum((pb * vb).reshape(tb, l, OUT_W), axis=1)                # (tb,128)

    # Head merge + output Linear as a single bf16 matmul; lane-dense result.
    out = jnp.dot(o.astype(jnp.bfloat16), Wbig,
                  preferred_element_type=jnp.float32) + bo_t            # (tb,128)
    out_ref[...] = out.astype(out_ref.dtype)


# ----------------------------- param packing --------------------------------
def pack_params(params):
    """Fold Q/K weights, the scale, the group-broadcast and the head-merge
    into a bf16 weight slab + a small f32 bias slab."""
    d, h, g = DIM, HEADS, NUM_TARGETS
    dh = DIM_HEAD
    scale = (d / h) ** (-0.5)

    f32 = lambda a: jnp.asarray(a, jnp.float32)
    target = f32(params["target"])
    wq, bq = f32(params["wq"]), f32(params["bq"]).reshape(1, d)
    wk, bk = f32(params["wk"]), f32(params["bk"]).reshape(1, d)
    wv, bv = f32(params["wv"]), f32(params["bv"]).reshape(1, d)
    wo, bo = f32(params["wo"]), f32(params["bo"]).reshape(1, d)
    assert target.shape == (g, d), target.shape
    for w in (wq, wk, wv, wo):
        assert w.shape == (d, d), w.shape

    # Q projection is batch-independent: hoist it (and the scale) out of the
    # kernel entirely, fusing it with the K projection per head.
    q = (target @ wq + bq) * scale                                   # (g, d)
    ws_parts, bs_parts = [], []
    for hh in range(h):
        sl = slice(hh * dh, (hh + 1) * dh)
        ws_parts.append(wk[:, sl] @ q[:, sl].T)                      # (d, g)
        bs_parts.append(bk[0, sl] @ q[:, sl].T)                      # (g,)
    Ws = jnp.concatenate(ws_parts, axis=1)                           # (d, HG)
    bs = jnp.concatenate(bs_parts, axis=0)                           # (HG,)

    # 128-wide attention intermediate lane layout: j = dh*HG + (h*G + g),
    # chosen so jnp.tile(p2, (1, 16)) reproduces p at every lane exactly.
    j = jnp.arange(OUT_W)
    hg_j = j % HG
    dh_j = j // HG
    h_j = hg_j // g
    g_j = hg_j % g
    src = h_j * dh + dh_j                                            # feature index

    Wvb = wv[:, src]                                                 # (d, 128)
    bvb = bv[0, src]                                                 # (128,)

    c = jnp.arange(OUT_W)                                            # c = group*D + n
    gp_c = c // d
    n_c = c % d
    Wbig = jnp.where(g_j[:, None] == gp_c[None, :], wo[src][:, n_c], 0.0)  # (128,128)
    bo_t = bo[0, n_c]                                                # (128,)

    def pad_rows(a, rows):
        out = jnp.zeros((rows, 128), jnp.float32)
        return out.at[: a.shape[0], : a.shape[1]].set(a)

    wslab = jnp.concatenate([
        pad_rows(Ws, 32),              # rows   0: 32
        pad_rows(Wvb, 32),             # rows  32: 64
        pad_rows(Wbig, 128),           # rows  64:192
    ], axis=0).astype(jnp.bfloat16)
    assert wslab.shape == (PARAM_ROWS, 128)

    bslab = jnp.concatenate([
        pad_rows(bs[None, :], 8),      # row   0
        pad_rows(bvb[None, :], 8),     # row   8
        pad_rows(bo_t[None, :], 8),    # row  16
    ], axis=0)                         # f32
    assert bslab.shape == (BIAS_ROWS, 128)
    return wslab, bslab


# ----------------------------- wrapper --------------------------------------
def memory_block_forward(x, params, tb_max=512):
    """x: (B, L, D), float32 or bfloat16.  Returns (B, G, D) in x.dtype."""
    b, l, d = x.shape
    assert l == TOKEN_NUM and d == DIM, (l, d)

    wslab, bslab = pack_params(params)

    # Batch tile: multiple of 8, and force an even grid of >= 2 steps so v7x
    # (2 TensorCores) gets full utilization via the "parallel" grid axis.
    half = (b + 1) // 2
    half = ((half + 7) // 8) * 8
    tb = max(8, min(tb_max, half))
    steps = (b + tb - 1) // tb
    if steps % 2:
        steps += 1
    b_pad = steps * tb

    x_bf = x.astype(jnp.bfloat16)          # halve HBM traffic; MXU-native operand
    if b_pad != b:
        x_bf = jnp.pad(x_bf, ((0, b_pad - b), (0, 0), (0, 0)))
    x_flat = x_bf.reshape(b_pad * l, d)    # free (contiguous) reinterpretation

    out_flat = pl.pallas_call(
        memory_block_kernel,
        out_shape=jax.ShapeDtypeStruct((b_pad, OUT_W), x.dtype),
        grid_spec=pltpu.PrefetchScalarGridSpec(
            num_scalar_prefetch=0,
            grid=(steps,),
            in_specs=[
                pl.BlockSpec((tb * l, d), lambda i: (i, 0)),            # x rows
                pl.BlockSpec((PARAM_ROWS, 128), lambda i: (0, 0)),      # bf16 weights
                pl.BlockSpec((BIAS_ROWS, 128), lambda i: (0, 0)),       # f32 biases
            ],
            out_specs=pl.BlockSpec((tb, OUT_W), lambda i: (i, 0)),      # lane-dense
        ),
        compiler_params=pltpu.CompilerParams(
            dimension_semantics=("parallel",),
            vmem_limit_bytes=32 * 1024 * 1024),
    )(x_flat, wslab, bslab)

    return out_flat[:b].reshape(b, NUM_TARGETS, DIM)


# ----------------------------- reference (pure JAX, f32) ---------------------
def reference_forward(x, params):
    b, l, d = x.shape
    h, dh = HEADS, DIM_HEAD
    tgt = jnp.broadcast_to(params["target"][None], (b,) + params["target"].shape)
    q = tgt @ params["wq"] + params["bq"]
    k = x @ params["wk"] + params["bk"]
    v = x @ params["wv"] + params["bv"]

    def split(t):
        return t.reshape(t.shape[0], t.shape[1], h, dh).transpose(0, 2, 1, 3)

    q, k, v = split(q), split(k), split(v)
    s = jnp.einsum("bhid,bhjd->bhij", q, k) * (d / h) ** (-0.5)
    attn = jax.nn.softmax(s, axis=-1)
    o = jnp.einsum("bhij,bhjd->bhid", attn, v)
    o = o.transpose(0, 2, 1, 3).reshape(b, -1, d)
    return o @ params["wo"] + params["bo"]


# ----------------------------- main ------------------------------------------
if __name__ == "__main__":
    key = jax.random.PRNGKey(0)
    ks = jax.random.split(key, 10)
    d = DIM
    bound = 1.0 / math.sqrt(d)

    def make_linear(kw, kb):
        # (in, out) layout; same distribution as torch's (out, in) + transpose.
        w = jax.random.uniform(kw, (d, d), jnp.float32, -bound, bound)
        bvec = jax.random.uniform(kb, (1, d), jnp.float32, -bound, bound)
        return w, bvec

    wq, bq = make_linear(ks[0], ks[1])
    wk, bk = make_linear(ks[2], ks[3])
    wv, bv = make_linear(ks[4], ks[5])
    wo, bo = make_linear(ks[6], ks[7])
    target = jax.random.uniform(ks[8], (NUM_TARGETS, d), jnp.float32)  # torch.rand

    params = dict(target=target, wq=wq, bq=bq, wk=wk, bk=bk,
                  wv=wv, bv=bv, wo=wo, bo=bo)

    B = 40
    x = jax.random.normal(ks[9], (B, TOKEN_NUM, d), jnp.float32)

    ref = reference_forward(x, params)

    # Tolerance 1e-2 because matmul operands are bf16 (f32 accumulate) and the
    # softmax denominator uses the approximate EUP reciprocal; observed error
    # is typically a few 1e-3 at these magnitudes.
    ATOL = RTOL = 1e-2

    # Default tiling (2 grid steps for B=40).
    out = memory_block_forward(x, params)
    jax.block_until_ready(out)
    assert out.shape == (B, NUM_TARGETS, d), out.shape
    assert jnp.allclose(out, ref, atol=ATOL, rtol=RTOL), \
        float(jnp.max(jnp.abs(out - ref)))

    # Smaller batch tile -> 4 grid steps + batch padding path.
    out2 = memory_block_forward(x, params, tb_max=16)
    jax.block_until_ready(out2)
    assert jnp.allclose(out2, ref, atol=ATOL, rtol=RTOL), \
        float(jnp.max(jnp.abs(out2 - ref)))

    print("KERNEL_OK")
</pallas_src>

<mosaic_0001>
module attributes {stable_mosaic.version = 11 : i64} {
  func.func @memory_block_kernel(%arg0: i32, %arg1: memref<192x32xbf16, #tpu.memory_space<vmem>>, %arg2: memref<192x128xbf16, #tpu.memory_space<vmem>>, %arg3: memref<24x128xf32, #tpu.memory_space<vmem>>, %arg4: memref<24x128xf32, #tpu.memory_space<vmem>>) attributes {dimension_semantics = [#tpu.dimension_semantics<parallel>], iteration_bounds = array<i64: 2>, scalar_prefetch = 0 : i64, scratch_operands = 0 : i64, tpu.core_type = #tpu.core_type<tc>, window_params = [{transform_indices = @transform_0, window_bounds = array<i64: 192, 32>}, {pipeline_mode = #tpu.pipeline_mode<synchronous>, transform_indices = @transform_1, window_bounds = array<i64: 192, 128>}, {pipeline_mode = #tpu.pipeline_mode<synchronous>, transform_indices = @transform_2, window_bounds = array<i64: 24, 128>}, {transform_indices = @transform_3, window_bounds = array<i64: 24, 128>}]} {
    %c0 = arith.constant 0 : index
    %c0_0 = arith.constant 0 : index
    %0 = vector.load %arg1[%c0, %c0_0] : memref<192x32xbf16, #tpu.memory_space<vmem>>, vector<192x32xbf16>
    %c0_1 = arith.constant 0 : index
    %c0_2 = arith.constant 0 : index
    %1 = vector.load %arg2[%c0_1, %c0_2] : memref<192x128xbf16, #tpu.memory_space<vmem>>, vector<32x8xbf16>
    %c32 = arith.constant 32 : index
    %c0_3 = arith.constant 0 : index
    %2 = vector.load %arg2[%c32, %c0_3] : memref<192x128xbf16, #tpu.memory_space<vmem>>, vector<32x128xbf16>
    %c64 = arith.constant 64 : index
    %c0_4 = arith.constant 0 : index
    %3 = vector.load %arg2[%c64, %c0_4] : memref<192x128xbf16, #tpu.memory_space<vmem>>, vector<128x128xbf16>
    %c0_5 = arith.constant 0 : index
    %c0_6 = arith.constant 0 : index
    %4 = vector.load %arg3[%c0_5, %c0_6] : memref<24x128xf32, #tpu.memory_space<vmem>>, vector<1x8xf32>
    %c8 = arith.constant 8 : index
    %c0_7 = arith.constant 0 : index
    %5 = vector.load %arg3[%c8, %c0_7] : memref<24x128xf32, #tpu.memory_space<vmem>>, vector<1x128xf32>
    %c16 = arith.constant 16 : index
    %c0_8 = arith.constant 0 : index
    %6 = vector.load %arg3[%c16, %c0_8] : memref<24x128xf32, #tpu.memory_space<vmem>>, vector<1x128xf32>
    %cst = arith.constant dense<0.000000e+00> : vector<192x8xf32>
    %7 = tpu.matmul %0, %1, %cst {dimension_numbers = #tpu.dot_dimension_numbers<[1], [0], [0], [1], [0, 0, 1, 1], [], []>} : vector<192x32xbf16>, vector<32x8xbf16>, vector<192x8xf32> -> vector<192x8xf32>
    %8 = vector.broadcast %4 : vector<1x8xf32> to vector<192x8xf32>
    %9 = arith.addf %7, %8 : vector<192x8xf32>
    %10 = vector.shape_cast %9 : vector<192x8xf32> to vector<24x8x8xf32>
    %cst_9 = arith.constant dense<0xFF800000> : vector<24x8xf32>
    %11 = vector.multi_reduction <maximumf>, %10, %cst_9 [1] : vector<24x8x8xf32> to vector<24x8xf32>
    %12 = vector.shape_cast %11 : vector<24x8xf32> to vector<24x1x8xf32>
    %13 = vector.broadcast %12 : vector<24x1x8xf32> to vector<24x8x8xf32>
    %14 = arith.subf %10, %13 : vector<24x8x8xf32>
    %15 = math.exp %14 : vector<24x8x8xf32>
    %cst_10 = arith.constant dense<0.000000e+00> : vector<24x8xf32>
    %16 = vector.multi_reduction <add>, %15, %cst_10 [1] : vector<24x8x8xf32> to vector<24x8xf32>
    %17 = vector.shape_cast %16 : vector<24x8xf32> to vector<24x1x8xf32>
    %18 = tpu.reciprocal %17 {approx = true} : vector<24x1x8xf32> -> vector<24x1x8xf32>
    %19 = vector.broadcast %18 : vector<24x1x8xf32> to vector<24x8x8xf32>
    %20 = arith.mulf %15, %19 : vector<24x8x8xf32>
    %21 = vector.shape_cast %20 : vector<24x8x8xf32> to vector<192x8xf32>
    %cst_11 = arith.constant dense<0.000000e+00> : vector<192x128xf32>
    %22 = tpu.matmul %0, %2, %cst_11 {dimension_numbers = #tpu.dot_dimension_numbers<[1], [0], [0], [1], [0, 0, 1, 1], [], []>} : vector<192x32xbf16>, vector<32x128xbf16>, vector<192x128xf32> -> vector<192x128xf32>
    %23 = vector.broadcast %5 : vector<1x128xf32> to vector<192x128xf32>
    %24 = arith.addf %22, %23 : vector<192x128xf32>
    %25 = tpu.concatenate %21, %21, %21, %21, %21, %21, %21, %21, %21, %21, %21, %21, %21, %21, %21, %21 in 1 : vector<192x8xf32>, vector<192x8xf32>, vector<192x8xf32>, vector<192x8xf32>, vector<192x8xf32>, vector<192x8xf32>, vector<192x8xf32>, vector<192x8xf32>, vector<192x8xf32>, vector<192x8xf32>, vector<192x8xf32>, vector<192x8xf32>, vector<192x8xf32>, vector<192x8xf32>, vector<192x8xf32>, vector<192x8xf32> -> vector<192x128xf32>
    %26 = arith.mulf %25, %24 : vector<192x128xf32>
    %27 = vector.shape_cast %26 : vector<192x128xf32> to vector<24x8x128xf32>
    %cst_12 = arith.constant dense<0.000000e+00> : vector<24x128xf32>
    %28 = vector.multi_reduction <add>, %27, %cst_12 [1] : vector<24x8x128xf32> to vector<24x128xf32>
    %29 = arith.truncf %28 : vector<24x128xf32> to vector<24x128xbf16>
    %cst_13 = arith.constant dense<0.000000e+00> : vector<24x128xf32>
    %30 = tpu.matmul %29, %3, %cst_13 {dimension_numbers = #tpu.dot_dimension_numbers<[1], [0], [0], [1], [0, 0, 1, 1], [], []>} : vector<24x128xbf16>, vector<128x128xbf16>, vector<24x128xf32> -> vector<24x128xf32>
    %31 = vector.broadcast %6 : vector<1x128xf32> to vector<24x128xf32>
    %32 = arith.addf %30, %31 : vector<24x128xf32>
    %c0_14 = arith.constant 0 : index
    %c0_15 = arith.constant 0 : index
    %33 = vector.load %arg4[%c0_14, %c0_15] : memref<24x128xf32, #tpu.memory_space<vmem>>, vector<24x128xf32>
    tpu.vector_store %arg4[%c0_14, %c0_15], %32 {strides = array<i32>} : memref<24x128xf32, #tpu.memory_space<vmem>>, vector<24x128xf32>,
    return
  }
  func.func @transform_0(%arg0: i32) -> (i32, i32) {
    %c0_i32 = arith.constant 0 : i32
    %c0_i32_0 = arith.constant 0 : i32
    return %arg0, %c0_i32 : i32, i32
  }
  func.func @transform_1(%arg0: i32) -> (i32, i32) {
    %c0_i32 = arith.constant 0 : i32
    %c0_i32_0 = arith.constant 0 : i32
    %c0_i32_1 = arith.constant 0 : i32
    return %c0_i32, %c0_i32_0 : i32, i32
  }
  func.func @transform_2(%arg0: i32) -> (i32, i32) {
    %c0_i32 = arith.constant 0 : i32
    %c0_i32_0 = arith.constant 0 : i32
    %c0_i32_1 = arith.constant 0 : i32
    return %c0_i32, %c0_i32_0 : i32, i32
  }
  func.func @transform_3(%arg0: i32) -> (i32, i32) {
    %c0_i32 = arith.constant 0 : i32
    %c0_i32_0 = arith.constant 0 : i32
    return %arg0, %c0_i32 : i32, i32
  }
}

</mosaic_0001>

<llo_original>
// kernel: tpu_custom_call.1
$region0: #{tpu_custom_call.1}
  #allocation0 [shape = 'u32[]', space=smem, size = 0x4, offset = 0x4, fixed_abs, tag = 'smem constant byte address 0x4 - core index']
  #allocation1 [shape = 'u32[144,128]{1,0:T(1,128)}', space=vmem, size = 0x12000, scoped, tag = 'internal scratch']
  %s0 = inlined_call_operand.vmem [shape: bf16[384,32], index: 0, kind: input, shape index: {}]
  %s1 = inlined_call_operand.vmem [shape: bf16[192,128], index: 1, kind: input, shape index: {}]
  %s2 = inlined_call_operand.vmem [shape: f32[24,128], index: 2, kind: input, shape index: {}]
  %s3 = inlined_call_operand.hbm [shape: f32[48,128], index: 3, kind: output, shape index: {}]
  %s4 = sld [smem:[#allocation0]]
  $region45: #{tpu_custom_call.1} parent=0
    _
  %s6 = ssub.s32 1, %s4
  %s7 = scalar_select 0, %s6, %s4
  $region1: #{tpu_custom_call.1} parent=0
    #allocation2 [shape = 'u8[24576]{0}', space=vmem, size = 0x6000, scoped, tag = 'output window, operand 0']
    #allocation3 [shape = 's32[2]{0}', space=sflag, size = 0x8, scoped, tag = 'scoped memory for tpu_custom_call.1']
    %8 = vsyncpa [#allocation3], 0
    %s9 = scalar_lea.sflag [#allocation3], 1
    %10 = vsyncpa %s9, 0
    loop: start=0, step=1, limit=4
    $region2: #{tpu_custom_call.1} parent=1 // loop_pre_header
      _
    $region3: #{tpu_custom_call.1} parent=1 // loop_header
      %s12 = sphi 0, %s16
      %p13 = scmp.ge.s32.totalorder %s12, 4
      %s22 = sphi 0, %s24
      %s25 = sphi 0, %s22
      %s26 = sphi 0, %s25
      %s42 = sphi 0, %s26
      %s46 = sphi 0, %s46
      %s48 = sphi 0, %s46
      %s49 = sphi 0, %s48
      %s63 = sphi 0, %s49
      %s67 = sphi 0, %s67
      %s69 = sphi 0, %s67
      %s70 = sphi 0, %s69
      %s84 = sphi 0, %s70
      %s90 = sphi 0, %s92
      %s93 = sphi 0, %s90
      %s94 = sphi 0, %s93
      %s110 = sphi 0, %s94
    $region4: #{tpu_custom_call.1} parent=1 // loop_header_branch
      %15 = sbr.rel (%p13) target = $region8
    $region5: #{tpu_custom_call.1} parent=1 // loop_body
      %s17 = ssub.s32 %s12, 1
      %s18 = ssub.s32 %s12, 2
      %s19 = sadd.s32 %s12, 1
      %s20 = ssub.s32 %s12, %s19
      %p21 = scmp.eq.s32.totalorder %s20, 0
      %s23 = sadd.s32 %s22, 1
      %s24 = scalar_select %p21, %s22, %s23
      %p27 = pneg %p21
      %p28 = scmp.eq.s32.totalorder %s12, 1
      %p29 = por %p27, %p28
      %p30 = scmp.ne.s32.totalorder %s22, %s25
      %p31 = scmp.eq.s32.totalorder %s12, 0
      %p32 = por %p30, %p31
      %p33 = scmp.ne.s32.totalorder %s22, %s25
      %p34 = scmp.eq.s32.totalorder %s17, 1
      %p35 = por %p33, %p34
      %p36 = scmp.ne.s32.totalorder %s25, %s26
      %p37 = scmp.eq.s32.totalorder %s17, 0
      %p38 = por %p36, %p37
      %p39 = scmp.ne.s32.totalorder %s25, %s26
      %p40 = scmp.eq.s32.totalorder %s18, 1
      %p41 = por %p39, %p40
      %p43 = scmp.ne.s32.totalorder %s26, %s42
      %p44 = scmp.eq.s32.totalorder %s18, 0
      %p45 = por %p43, %p44
      %s47 = sadd.s32 %s46, 1
      %p50 = scmp.eq.s32.totalorder %s12, 1
      %p51 = scmp.ne.s32.totalorder %s46, %s48
      %p52 = scmp.eq.s32.totalorder %s12, 0
      %p53 = por %p51, %p52
      %p54 = scmp.ne.s32.totalorder %s46, %s48
      %p55 = scmp.eq.s32.totalorder %s17, 1
      %p56 = por %p54, %p55
      %p57 = scmp.ne.s32.totalorder %s48, %s49
      %p58 = scmp.eq.s32.totalorder %s17, 0
      %p59 = por %p57, %p58
      %p60 = scmp.ne.s32.totalorder %s48, %s49
      %p61 = scmp.eq.s32.totalorder %s18, 1
      %p62 = por %p60, %p61
      %p64 = scmp.ne.s32.totalorder %s49, %s63
      %p65 = scmp.eq.s32.totalorder %s18, 0
      %p66 = por %p64, %p65
      %s68 = sadd.s32 %s67, 1
      %p71 = scmp.eq.s32.totalorder %s12, 1
      %p72 = scmp.ne.s32.totalorder %s67, %s69
      %p73 = scmp.eq.s32.totalorder %s12, 0
      %p74 = por %p72, %p73
      %p75 = scmp.ne.s32.totalorder %s67, %s69
      %p76 = scmp.eq.s32.totalorder %s17, 1
      %p77 = por %p75, %p76
      %p78 = scmp.ne.s32.totalorder %s69, %s70
      %p79 = scmp.eq.s32.totalorder %s17, 0
      %p80 = por %p78, %p79
      %p81 = scmp.ne.s32.totalorder %s69, %s70
      %p82 = scmp.eq.s32.totalorder %s18, 1
      %p83 = por %p81, %p82
      %p85 = scmp.ne.s32.totalorder %s70, %s84
      %p86 = scmp.eq.s32.totalorder %s18, 0
      %p87 = por %p85, %p86
      %s88 = ssub.s32 %s12, %s19
      %p89 = scmp.eq.s32.totalorder %s88, 0
      %s91 = sadd.s32 %s90, 1
      %s92 = scalar_select %p89, %s90, %s91
      %p95 = pneg %p89
      %p96 = scmp.eq.s32.totalorder %s12, 1
      %p97 = por %p95, %p96
      %p98 = scmp.ne.s32.totalorder %s90, %s93
      %p99 = scmp.eq.s32.totalorder %s12, 0
      %p100 = por %p98, %p99
      %p101 = scmp.ne.s32.totalorder %s90, %s93
      %p102 = scmp.eq.s32.totalorder %s17, 1
      %p103 = por %p101, %p102
      %p104 = scmp.ne.s32.totalorder %s93, %s94
      %p105 = scmp.eq.s32.totalorder %s17, 0
      %p106 = por %p104, %p105
      %p107 = scmp.ne.s32.totalorder %s93, %s94
      %p108 = scmp.eq.s32.totalorder %s18, 1
      %p109 = por %p107, %p108
      %p111 = scmp.ne.s32.totalorder %s94, %s110
      %p112 = scmp.eq.s32.totalorder %s18, 0
      %p113 = por %p111, %p112
      %p114 = scmp.le.s32.totalorder 1, %s12
      %p115 = scmp.lt.s32.totalorder %s12, 3
      %p116 = pnand %p114, %p115
      %p117 = pneg %p116
      // Predicated region
      $region9: #{tpu_custom_call.1} parent=5 // pred_check
        _
      $region10: #{tpu_custom_call.1} parent=5 // pred_check_branch
        %119 = sbr.rel (%p116) target = $region12
      $region11: #{tpu_custom_call.1} parent=5 // pred_region
        %s120 = ssub.s32 %s12, 1
        // Predicated region
        $region13: #{tpu_custom_call.1} parent=11 // pred_check
          %p121 = pneg %p59
        $region14: #{tpu_custom_call.1} parent=11 // pred_check_branch
          %123 = sbr.rel (%p121) target = $region16
        $region15: #{tpu_custom_call.1} parent=11 // pred_region
          _
        $region16: #{tpu_custom_call.1} parent=11 // pred_fallthru
          _
        // Predicated region
        $region17: #{tpu_custom_call.1} parent=11 // pred_check
          %p124 = pneg %p80
        $region18: #{tpu_custom_call.1} parent=11 // pred_check_branch
          %126 = sbr.rel (%p124) target = $region20
        $region19: #{tpu_custom_call.1} parent=11 // pred_region
          _
        $region20: #{tpu_custom_call.1} parent=11 // pred_fallthru
          _
      $region12: #{tpu_custom_call.1} parent=5 // pred_fallthru
        _
      %p127 = scmp.lt.s32.totalorder %s12, 2
      // Predicated region
      $region21: #{tpu_custom_call.1} parent=5 // pred_check
        %p128 = pneg %p127
      $region22: #{tpu_custom_call.1} parent=5 // pred_check_branch
        %130 = sbr.rel (%p128) target = $region24
      $region23: #{tpu_custom_call.1} parent=5 // pred_region
        // Predicated region
        $region25: #{tpu_custom_call.1} parent=23 // pred_check
          %p131 = pneg %p32
        $region26: #{tpu_custom_call.1} parent=23 // pred_check_branch
          %133 = sbr.rel (%p131) target = $region28
        $region27: #{tpu_custom_call.1} parent=23 // pred_region
          %s134 = smul.u32 24, %s12
          %p135 = scmp.lt.s32.totalorder %s134, 47
          %s136 = scalar_select %p135, %s134, 47
          %s137 = smul.addr %s136, 4
          %s138 = scalar_lea.vmem %s0, %s137
          %s139 = smul.u32 24, %s12
        $region28: #{tpu_custom_call.1} parent=23 // pred_fallthru
          _
      $region24: #{tpu_custom_call.1} parent=5 // pred_fallthru
        _
      %p140 = scmp.le.s32.totalorder 1, %s12
      %p141 = scmp.lt.s32.totalorder %s12, 3
      %p142 = pnand %p140, %p141
      %p143 = pneg %p142
      // Predicated region
      $region29: #{tpu_custom_call.1} parent=5 // pred_check
        _
      $region30: #{tpu_custom_call.1} parent=5 // pred_check_branch
        %145 = sbr.rel (%p142) target = $region32
      $region31: #{tpu_custom_call.1} parent=5 // pred_region
        %s146 = ssub.s32 %s12, 1
        %s147 = smul.u32 24, %s17
        %p148 = scmp.lt.s32.totalorder %s147, 47
        %s149 = scalar_select %p148, %s147, 47
        %s150 = smul.addr %s149, 4
        %s151 = scalar_lea.vmem %s0, %s150
        %p152 = pneg %p38
        %p153 = pneg %p35
        %p154 = pneg %p59
        %p155 = pneg %p56
        %p156 = pneg %p80
        %p157 = pneg %p77
        %p158 = pneg %p106
        %p159 = pneg %p103
        %s160 = sand.u32 %s93, 1
        %s161 = scalar_lea.sflag [#allocation3], %s160
        %s162 = sand.u32 %s93, 1
        %s163 = smul.addr %s162, 24
        %s164 = scalar_lea.vmem [#allocation2], %s163
        %s165 = smul.u32 24, %s17
        %p166 = scmp.lt.s32.totalorder %s165, 47
        %s167 = scalar_select %p166, %s165, 47
        %s168 = smul.addr %s167, 4
        %s169 = scalar_lea.vmem %s0, %s168
        %s170 = smul.u32 24, %s17
        %s171 = smul.u32 3, %s17
        %v173 = vld [vmem:[%s169] sm:$0xf]
        %v174 = vld [vmem:[%s169 + $0x4] sm:$0xf]
        %v175 = vld [vmem:[%s169 + $0x8] sm:$0xf]
        %v176 = vld [vmem:[%s169 + $0xc] sm:$0xf]
        %v177 = vld [vmem:[%s169 + $0x10] sm:$0xf]
        %v178 = vld [vmem:[%s169 + $0x14] sm:$0xf]
        %v179 = vld [vmem:[%s169 + $0x18] sm:$0xf]
        %v180 = vld [vmem:[%s169 + $0x1c] sm:$0xf]
        %v181 = vld [vmem:[%s169 + $0x20] sm:$0xf]
        %v182 = vld [vmem:[%s169 + $0x24] sm:$0xf]
        %v183 = vld [vmem:[%s169 + $0x28] sm:$0xf]
        %v184 = vld [vmem:[%s169 + $0x2c] sm:$0xf]
        %v185 = vld [vmem:[%s169 + $0x30] sm:$0xf]
        %v186 = vld [vmem:[%s169 + $0x34] sm:$0xf]
        %v187 = vld [vmem:[%s169 + $0x38] sm:$0xf]
        %v188 = vld [vmem:[%s169 + $0x3c] sm:$0xf]
        %v189 = vld [vmem:[%s169 + $0x40] sm:$0xf]
        %v190 = vld [vmem:[%s169 + $0x44] sm:$0xf]
        %v191 = vld [vmem:[%s169 + $0x48] sm:$0xf]
        %v192 = vld [vmem:[%s169 + $0x4c] sm:$0xf]
        %v193 = vld [vmem:[%s169 + $0x50] sm:$0xf]
        %v194 = vld [vmem:[%s169 + $0x54] sm:$0xf]
        %v195 = vld [vmem:[%s169 + $0x58] sm:$0xf]
        %v196 = vld [vmem:[%s169 + $0x5c] sm:$0xf]
        %v197 = vld [vmem:[%s1] sm:$0xf]
        %v198 = vld [vmem:[%s1 + $0x4] sm:$0xf]
        %v199 = vld [vmem:[%s1 + $0x8] sm:$0xf]
        %v200 = vld [vmem:[%s1 + $0xc] sm:$0xf]
        %v201 = vld [vmem:[%s1 + $0x10] sm:$0xf]
        %v202 = vld [vmem:[%s1 + $0x14] sm:$0xf]
        %v203 = vld [vmem:[%s1 + $0x18] sm:$0xf]
        %v204 = vld [vmem:[%s1 + $0x1c] sm:$0xf]
        %v205 = vld [vmem:[%s1 + $0x20] sm:$0xf]
        %v206 = vld [vmem:[%s1 + $0x24] sm:$0xf]
        %v207 = vld [vmem:[%s1 + $0x28] sm:$0xf]
        %v208 = vld [vmem:[%s1 + $0x2c] sm:$0xf]
        %v209 = vld [vmem:[%s1 + $0x30] sm:$0xf]
        %v210 = vld [vmem:[%s1 + $0x34] sm:$0xf]
        %v211 = vld [vmem:[%s1 + $0x38] sm:$0xf]
        %v212 = vld [vmem:[%s1 + $0x3c] sm:$0xf]
        %v213 = vld [vmem:[%s1 + $0x40] sm:$0xf]
        %v214 = vld [vmem:[%s1 + $0x44] sm:$0xf]
        %v215 = vld [vmem:[%s1 + $0x48] sm:$0xf]
        %v216 = vld [vmem:[%s1 + $0x4c] sm:$0xf]
        %v217 = vld [vmem:[%s1 + $0x50] sm:$0xf]
        %v218 = vld [vmem:[%s1 + $0x54] sm:$0xf]
        %v219 = vld [vmem:[%s1 + $0x58] sm:$0xf]
        %v220 = vld [vmem:[%s1 + $0x5c] sm:$0xf]
        %v221 = vld [vmem:[%s2] sm:$0x1]
        %v222 = vld [vmem:[%s2 + $0x8] sm:$0x1]
        %v223 = vld [vmem:[%s2 + $0x10] sm:$0x1]
        %v224 = vlaneseq
        %v225 = vshrl.u32 %v224, 7
        %v226 = vsub.s32 0, %v225
        %v227 = vrot.slane %v221, %v226
        %v252 = vunpack.c.l.b16 %v173
        %v253 = vunpack.c.l.b16 %v174
        %v254 = vunpack.c.l.b16 %v175
        %v255 = vunpack.c.l.b16 %v176
        %v256 = vunpack.c.l.b16 %v177
        %v257 = vunpack.c.l.b16 %v178
        %v258 = vunpack.c.l.b16 %v179
        %v259 = vunpack.c.l.b16 %v180
        %v260 = vunpack.c.l.b16 %v181
        %v261 = vunpack.c.l.b16 %v182
        %v262 = vunpack.c.l.b16 %v183
        %v263 = vunpack.c.l.b16 %v184
        %v264 = vunpack.c.l.b16 %v185
        %v265 = vunpack.c.l.b16 %v186
        %v266 = vunpack.c.l.b16 %v187
        %v267 = vunpack.c.l.b16 %v188
        %v268 = vunpack.c.l.b16 %v189
        %v269 = vunpack.c.l.b16 %v190
        %v270 = vunpack.c.l.b16 %v191
        %v271 = vunpack.c.l.b16 %v192
        %v272 = vunpack.c.l.b16 %v193
        %v273 = vunpack.c.l.b16 %v194
        %v274 = vunpack.c.l.b16 %v195
        %v275 = vunpack.c.l.b16 %v196
        %v276 = vpack.c.b16 %v253, %v252
        %v277 = vpack.c.b16 %v255, %v254
        %v278 = vpack.c.b16 %v257, %v256
        %v279 = vpack.c.b16 %v259, %v258
        %v280 = vpack.c.b16 %v261, %v260
        %v281 = vpack.c.b16 %v263, %v262
        %v282 = vpack.c.b16 %v265, %v264
        %v283 = vpack.c.b16 %v267, %v266
        %v284 = vpack.c.b16 %v269, %v268
        %v285 = vpack.c.b16 %v271, %v270
        %v286 = vpack.c.b16 %v273, %v272
        %v287 = vpack.c.b16 %v275, %v274
        %v292 = vunpack.c.l.b16 %v197
        %v293 = vunpack.c.l.b16 %v198
        %v294 = vunpack.c.l.b16 %v199
        %v295 = vunpack.c.l.b16 %v200
        %v296 = vpack.c.b16 %v293, %v292
        %v297 = vpack.c.b16 %v295, %v294
        %vm300 = vcmask 261120
        %v302 = vsel %vm300, %v276, 0
        %v305 = vsel %vm300, %v277, 0
        %v308 = vsel %vm300, %v278, 0
        %v311 = vsel %vm300, %v279, 0
        %v314 = vsel %vm300, %v280, 0
        %v317 = vsel %vm300, %v281, 0
        %v320 = vsel %vm300, %v282, 0
        %v323 = vsel %vm300, %v283, 0
        %v326 = vsel %vm300, %v284, 0
        %v329 = vsel %vm300, %v285, 0
        %v332 = vsel %vm300, %v286, 0
        %v335 = vsel %vm300, %v287, 0
        %337 = vmatprep.subr.bf16.mxu0 0
        %338 = vmatpush1.bf16.msra.mxu0 %v296
        %339 = vmatprep.subr.bf16.mxu0 0
        %340 = vmatpush1.bf16.msra.mxu0 %v297
        %341 = vmatprep.subr.bf16.mxu0 0
        %342 = vmatpush1.bf16.msra.mxu0 0
        %343 = vmatprep.subr.bf16.mxu0 0
        %344 = vmatpush1.bf16.msra.mxu0 0
        %345 = vmatprep.subr.bf16.mxu0 0
        %346 = vmatpush1.bf16.msra.mxu0 0
        %347 = vmatprep.subr.bf16.mxu0 0
        %348 = vmatpush1.bf16.msra.mxu0 0
        %349 = vmatprep.subr.bf16.mxu0 0
        %350 = vmatpush1.bf16.msra.mxu0 0
        %351 = vmatprep.subr.bf16.mxu0 0
        %352 = vmatpush1.bf16.msra.mxu0 0
        %353 = vmatprep.subr.bf16.mxu0 0
        %354 = vmatpush1.bf16.msra.mxu0 0
        %355 = vmatprep.subr.bf16.mxu0 0
        %356 = vmatpush1.bf16.msra.mxu0 0
        %357 = vmatprep.subr.bf16.mxu0 0
        %358 = vmatpush1.bf16.msra.mxu0 0
        %359 = vmatprep.subr.bf16.mxu0 0
        %360 = vmatpush1.bf16.msra.mxu0 0
        %361 = vmatprep.subr.bf16.mxu0 0
        %362 = vmatpush1.bf16.msra.mxu0 0
        %363 = vmatprep.subr.bf16.mxu0 0
        %364 = vmatpush1.bf16.msra.mxu0 0
        %365 = vmatprep.subr.bf16.mxu0 0
        %366 = vmatpush1.bf16.msra.mxu0 0
        %367 = vmatprep.subr.bf16.mxu0 0
        %368 = vmatpush1.bf16.msra.mxu0 0
        %369 = vmatprep.mubr.bf16.mxu0 0
        %370 = vmatmul.mubr.bf16.gmra.mrb[0].mxu0 %v302
        %v371 = vpop.f32.mrb[0].mxu0
        %v372 = vadd.f32 %v227, %v371
        %v373 = vpop.f32.mrb[0].mxu0
        %v374 = vpop.f32.mrb[0].mxu0
        %v375 = vadd.f32 %v227, %v374
        %v376 = vpop.f32.mrb[0].mxu0
        %377 = vmatprep.mubr.bf16.mxu0 0
        %378 = vmatmul.mubr.bf16.gmra.mrb[0].mxu0 %v305
        %v379 = vpop.f32.mrb[0].mxu0
        %v380 = vadd.f32 %v227, %v379
        %v381 = vpop.f32.mrb[0].mxu0
        %v382 = vpop.f32.mrb[0].mxu0
        %v383 = vadd.f32 %v227, %v382
        %v384 = vpop.f32.mrb[0].mxu0
        %385 = vmatprep.mubr.bf16.mxu0 0
        %386 = vmatmul.mubr.bf16.gmra.mrb[0].mxu0 %v308
        %v387 = vpop.f32.mrb[0].mxu0
        %v388 = vadd.f32 %v227, %v387
        %v389 = vpop.f32.mrb[0].mxu0
        %v390 = vpop.f32.mrb[0].mxu0
        %v391 = vadd.f32 %v227, %v390
        %v392 = vpop.f32.mrb[0].mxu0
        %393 = vmatprep.mubr.bf16.mxu0 0
        %394 = vmatmul.mubr.bf16.gmra.mrb[0].mxu0 %v311
        %v395 = vpop.f32.mrb[0].mxu0
        %v396 = vadd.f32 %v227, %v395
        %v397 = vpop.f32.mrb[0].mxu0
        %v398 = vpop.f32.mrb[0].mxu0
        %v399 = vadd.f32 %v227, %v398
        %v400 = vpop.f32.mrb[0].mxu0
        %401 = vmatprep.mubr.bf16.mxu0 0
        %402 = vmatmul.mubr.bf16.gmra.mrb[0].mxu0 %v314
        %v403 = vpop.f32.mrb[0].mxu0
        %v404 = vadd.f32 %v227, %v403
        %v405 = vpop.f32.mrb[0].mxu0
        %v406 = vpop.f32.mrb[0].mxu0
        %v407 = vadd.f32 %v227, %v406
        %v408 = vpop.f32.mrb[0].mxu0
        %409 = vmatprep.mubr.bf16.mxu0 0
        %410 = vmatmul.mubr.bf16.gmra.mrb[0].mxu0 %v317
        %v411 = vpop.f32.mrb[0].mxu0
        %v412 = vadd.f32 %v227, %v411
        %v413 = vpop.f32.mrb[0].mxu0
        %v414 = vpop.f32.mrb[0].mxu0
        %v415 = vadd.f32 %v227, %v414
        %v416 = vpop.f32.mrb[0].mxu0
        %417 = vmatprep.mubr.bf16.mxu0 0
        %418 = vmatmul.mubr.bf16.gmra.mrb[0].mxu0 %v320
        %v419 = vpop.f32.mrb[0].mxu0
        %v420 = vadd.f32 %v227, %v419
        %v421 = vpop.f32.mrb[0].mxu0
        %v422 = vpop.f32.mrb[0].mxu0
        %v423 = vadd.f32 %v227, %v422
        %v424 = vpop.f32.mrb[0].mxu0
        %425 = vmatprep.mubr.bf16.mxu0 0
        %426 = vmatmul.mubr.bf16.gmra.mrb[0].mxu0 %v323
        %v427 = vpop.f32.mrb[0].mxu0
        %v428 = vadd.f32 %v227, %v427
        %v429 = vpop.f32.mrb[0].mxu0
        %v430 = vpop.f32.mrb[0].mxu0
        %v431 = vadd.f32 %v227, %v430
        %v432 = vpop.f32.mrb[0].mxu0
        %433 = vmatprep.mubr.bf16.mxu0 0
        %434 = vmatmul.mubr.bf16.gmra.mrb[0].mxu0 %v326
        %v435 = vpop.f32.mrb[0].mxu0
        %v436 = vadd.f32 %v227, %v435
        %v437 = vpop.f32.mrb[0].mxu0
        %v438 = vpop.f32.mrb[0].mxu0
        %v439 = vadd.f32 %v227, %v438
        %v440 = vpop.f32.mrb[0].mxu0
        %441 = vmatprep.mubr.bf16.mxu0 0
        %442 = vmatmul.mubr.bf16.gmra.mrb[0].mxu0 %v329
        %v443 = vpop.f32.mrb[0].mxu0
        %v444 = vadd.f32 %v227, %v443
        %v445 = vpop.f32.mrb[0].mxu0
        %v446 = vpop.f32.mrb[0].mxu0
        %v447 = vadd.f32 %v227, %v446
        %v448 = vpop.f32.mrb[0].mxu0
        %449 = vmatprep.mubr.bf16.mxu0 0
        %450 = vmatmul.mubr.bf16.gmra.mrb[0].mxu0 %v332
        %v451 = vpop.f32.mrb[0].mxu0
        %v452 = vadd.f32 %v227, %v451
        %v453 = vpop.f32.mrb[0].mxu0
        %v454 = vpop.f32.mrb[0].mxu0
        %v455 = vadd.f32 %v227, %v454
        %v456 = vpop.f32.mrb[0].mxu0
        %457 = vmatprep.mubr.bf16.mxu0 0
        %458 = vmatmul.mubr.bf16.gmra.mrb[0].mxu0 %v335
        %v459 = vpop.f32.mrb[0].mxu0
        %v460 = vadd.f32 %v227, %v459
        %v461 = vpop.f32.mrb[0].mxu0
        %v462 = vpop.f32.mrb[0].mxu0
        %v463 = vadd.f32 %v227, %v462
        %v464 = vpop.f32.mrb[0].mxu0
        %465 = vdwg.mxu0
        %vm466 = vcmask 64512
        %v467 = vsel %vm466, %v372, -inf
        %v468 = vrot.slane %v467, 4
        %v469 = vmax.f32 %v467, %v468
        %v470 = vrot.slane %v469, 2
        %v471 = vmax.f32 %v469, %v470
        %v472 = vrot.slane %v471, 1
        %v473 = vmax.f32 %v471, %v472
        %v474 = vsel %vm466, %v375, -inf
        %v475 = vrot.slane %v474, 4
        %v476 = vmax.f32 %v474, %v475
        %v477 = vrot.slane %v476, 2
        %v478 = vmax.f32 %v476, %v477
        %v479 = vrot.slane %v478, 1
        %v480 = vmax.f32 %v478, %v479
        %v481 = vsel %vm466, %v380, -inf
        %v482 = vrot.slane %v481, 4
        %v483 = vmax.f32 %v481, %v482
        %v484 = vrot.slane %v483, 2
        %v485 = vmax.f32 %v483, %v484
        %v486 = vrot.slane %v485, 1
        %v487 = vmax.f32 %v485, %v486
        %v488 = vsel %vm466, %v383, -inf
        %v489 = vrot.slane %v488, 4
        %v490 = vmax.f32 %v488, %v489
        %v491 = vrot.slane %v490, 2
        %v492 = vmax.f32 %v490, %v491
        %v493 = vrot.slane %v492, 1
        %v494 = vmax.f32 %v492, %v493
        %v495 = vsel %vm466, %v388, -inf
        %v496 = vrot.slane %v495, 4
        %v497 = vmax.f32 %v495, %v496
        %v498 = vrot.slane %v497, 2
        %v499 = vmax.f32 %v497, %v498
        %v500 = vrot.slane %v499, 1
        %v501 = vmax.f32 %v499, %v500
        %v502 = vsel %vm466, %v391, -inf
        %v503 = vrot.slane %v502, 4
        %v504 = vmax.f32 %v502, %v503
        %v505 = vrot.slane %v504, 2
        %v506 = vmax.f32 %v504, %v505
        %v507 = vrot.slane %v506, 1
        %v508 = vmax.f32 %v506, %v507
        %v509 = vsel %vm466, %v396, -inf
        %v510 = vrot.slane %v509, 4
        %v511 = vmax.f32 %v509, %v510
        %v512 = vrot.slane %v511, 2
        %v513 = vmax.f32 %v511, %v512
        %v514 = vrot.slane %v513, 1
        %v515 = vmax.f32 %v513, %v514
        %v516 = vsel %vm466, %v399, -inf
        %v517 = vrot.slane %v516, 4
        %v518 = vmax.f32 %v516, %v517
        %v519 = vrot.slane %v518, 2
        %v520 = vmax.f32 %v518, %v519
        %v521 = vrot.slane %v520, 1
        %v522 = vmax.f32 %v520, %v521
        %v523 = vsel %vm466, %v404, -inf
        %v524 = vrot.slane %v523, 4
        %v525 = vmax.f32 %v523, %v524
        %v526 = vrot.slane %v525, 2
        %v527 = vmax.f32 %v525, %v526
        %v528 = vrot.slane %v527, 1
        %v529 = vmax.f32 %v527, %v528
        %v530 = vsel %vm466, %v407, -inf
        %v531 = vrot.slane %v530, 4
        %v532 = vmax.f32 %v530, %v531
        %v533 = vrot.slane %v532, 2
        %v534 = vmax.f32 %v532, %v533
        %v535 = vrot.slane %v534, 1
        %v536 = vmax.f32 %v534, %v535
        %v537 = vsel %vm466, %v412, -inf
        %v538 = vrot.slane %v537, 4
        %v539 = vmax.f32 %v537, %v538
        %v540 = vrot.slane %v539, 2
        %v541 = vmax.f32 %v539, %v540
        %v542 = vrot.slane %v541, 1
        %v543 = vmax.f32 %v541, %v542
        %v544 = vsel %vm466, %v415, -inf
        %v545 = vrot.slane %v544, 4
        %v546 = vmax.f32 %v544, %v545
        %v547 = vrot.slane %v546, 2
        %v548 = vmax.f32 %v546, %v547
        %v549 = vrot.slane %v548, 1
        %v550 = vmax.f32 %v548, %v549
        %v551 = vsel %vm466, %v420, -inf
        %v552 = vrot.slane %v551, 4
        %v553 = vmax.f32 %v551, %v552
        %v554 = vrot.slane %v553, 2
        %v555 = vmax.f32 %v553, %v554
        %v556 = vrot.slane %v555, 1
        %v557 = vmax.f32 %v555, %v556
        %v558 = vsel %vm466, %v423, -inf
        %v559 = vrot.slane %v558, 4
        %v560 = vmax.f32 %v558, %v559
        %v561 = vrot.slane %v560, 2
        %v562 = vmax.f32 %v560, %v561
        %v563 = vrot.slane %v562, 1
        %v564 = vmax.f32 %v562, %v563
        %v565 = vsel %vm466, %v428, -inf
        %v566 = vrot.slane %v565, 4
        %v567 = vmax.f32 %v565, %v566
        %v568 = vrot.slane %v567, 2
        %v569 = vmax.f32 %v567, %v568
        %v570 = vrot.slane %v569, 1
        %v571 = vmax.f32 %v569, %v570
        %v572 = vsel %vm466, %v431, -inf
        %v573 = vrot.slane %v572, 4
        %v574 = vmax.f32 %v572, %v573
        %v575 = vrot.slane %v574, 2
        %v576 = vmax.f32 %v574, %v575
        %v577 = vrot.slane %v576, 1
        %v578 = vmax.f32 %v576, %v577
        %v579 = vsel %vm466, %v436, -inf
        %v580 = vrot.slane %v579, 4
        %v581 = vmax.f32 %v579, %v580
        %v582 = vrot.slane %v581, 2
        %v583 = vmax.f32 %v581, %v582
        %v584 = vrot.slane %v583, 1
        %v585 = vmax.f32 %v583, %v584
        %v586 = vsel %vm466, %v439, -inf
        %v587 = vrot.slane %v586, 4
        %v588 = vmax.f32 %v586, %v587
        %v589 = vrot.slane %v588, 2
        %v590 = vmax.f32 %v588, %v589
        %v591 = vrot.slane %v590, 1
        %v592 = vmax.f32 %v590, %v591
        %v593 = vsel %vm466, %v444, -inf
        %v594 = vrot.slane %v593, 4
        %v595 = vmax.f32 %v593, %v594
        %v596 = vrot.slane %v595, 2
        %v597 = vmax.f32 %v595, %v596
        %v598 = vrot.slane %v597, 1
        %v599 = vmax.f32 %v597, %v598
        %v600 = vsel %vm466, %v447, -inf
        %v601 = vrot.slane %v600, 4
        %v602 = vmax.f32 %v600, %v601
        %v603 = vrot.slane %v602, 2
        %v604 = vmax.f32 %v602, %v603
        %v605 = vrot.slane %v604, 1
        %v606 = vmax.f32 %v604, %v605
        %v607 = vsel %vm466, %v452, -inf
        %v608 = vrot.slane %v607, 4
        %v609 = vmax.f32 %v607, %v608
        %v610 = vrot.slane %v609, 2
        %v611 = vmax.f32 %v609, %v610
        %v612 = vrot.slane %v611, 1
        %v613 = vmax.f32 %v611, %v612
        %v614 = vsel %vm466, %v455, -inf
        %v615 = vrot.slane %v614, 4
        %v616 = vmax.f32 %v614, %v615
        %v617 = vrot.slane %v616, 2
        %v618 = vmax.f32 %v616, %v617
        %v619 = vrot.slane %v618, 1
        %v620 = vmax.f32 %v618, %v619
        %v621 = vsel %vm466, %v460, -inf
        %v622 = vrot.slane %v621, 4
        %v623 = vmax.f32 %v621, %v622
        %v624 = vrot.slane %v623, 2
        %v625 = vmax.f32 %v623, %v624
        %v626 = vrot.slane %v625, 1
        %v627 = vmax.f32 %v625, %v626
        %v628 = vsel %vm466, %v463, -inf
        %v629 = vrot.slane %v628, 4
        %v630 = vmax.f32 %v628, %v629
        %v631 = vrot.slane %v630, 2
        %v632 = vmax.f32 %v630, %v631
        %v633 = vrot.slane %v632, 1
        %v634 = vmax.f32 %v632, %v633
        %v635 = vsub.f32 %v372, %v473
        %v636 = vsub.f32 %v375, %v480
        %v637 = vsub.f32 %v380, %v487
        %v638 = vsub.f32 %v383, %v494
        %v639 = vsub.f32 %v388, %v501
        %v640 = vsub.f32 %v391, %v508
        %v641 = vsub.f32 %v396, %v515
        %v642 = vsub.f32 %v399, %v522
        %v643 = vsub.f32 %v404, %v529
        %v644 = vsub.f32 %v407, %v536
        %v645 = vsub.f32 %v412, %v543
        %v646 = vsub.f32 %v415, %v550
        %v647 = vsub.f32 %v420, %v557
        %v648 = vsub.f32 %v423, %v564
        %v649 = vsub.f32 %v428, %v571
        %v650 = vsub.f32 %v431, %v578
        %v651 = vsub.f32 %v436, %v585
        %v652 = vsub.f32 %v439, %v592
        %v653 = vsub.f32 %v444, %v599
        %v654 = vsub.f32 %v447, %v606
        %v655 = vsub.f32 %v452, %v613
        %v656 = vsub.f32 %v455, %v620
        %v657 = vsub.f32 %v460, %v627
        %v658 = vsub.f32 %v463, %v634
        %v659 = vmul.f32 %v635, 1.442695
        %v660 = vpow.pop %v659
        %v661 = vmul.f32 %v636, 1.442695
        %v662 = vpow.pop %v661
        %v663 = vmul.f32 %v637, 1.442695
        %v664 = vpow.pop %v663
        %v665 = vmul.f32 %v638, 1.442695
        %v666 = vpow.pop %v665
        %v667 = vmul.f32 %v639, 1.442695
        %v668 = vpow.pop %v667
        %v669 = vmul.f32 %v640, 1.442695
        %v670 = vpow.pop %v669
        %v671 = vmul.f32 %v641, 1.442695
        %v672 = vpow.pop %v671
        %v673 = vmul.f32 %v642, 1.442695
        %v674 = vpow.pop %v673
        %v675 = vmul.f32 %v643, 1.442695
        %v676 = vpow.pop %v675
        %v677 = vmul.f32 %v644, 1.442695
        %v678 = vpow.pop %v677
        %v679 = vmul.f32 %v645, 1.442695
        %v680 = vpow.pop %v679
        %v681 = vmul.f32 %v646, 1.442695
        %v682 = vpow.pop %v681
        %v683 = vmul.f32 %v647, 1.442695
        %v684 = vpow.pop %v683
        %v685 = vmul.f32 %v648, 1.442695
        %v686 = vpow.pop %v685
        %v687 = vmul.f32 %v649, 1.442695
        %v688 = vpow.pop %v687
        %v689 = vmul.f32 %v650, 1.442695
        %v690 = vpow.pop %v689
        %v691 = vmul.f32 %v651, 1.442695
        %v692 = vpow.pop %v691
        %v693 = vmul.f32 %v652, 1.442695
        %v694 = vpow.pop %v693
        %v695 = vmul.f32 %v653, 1.442695
        %v696 = vpow.pop %v695
        %v697 = vmul.f32 %v654, 1.442695
        %v698 = vpow.pop %v697
        %v699 = vmul.f32 %v655, 1.442695
        %v700 = vpow.pop %v699
        %v701 = vmul.f32 %v656, 1.442695
        %v702 = vpow.pop %v701
        %v703 = vmul.f32 %v657, 1.442695
        %v704 = vpow.pop %v703
        %v705 = vmul.f32 %v658, 1.442695
        %v706 = vpow.pop %v705
        %v707 = vsel %vm466, %v660, 0.0
        %v708 = vrot.slane %v707, 4
        %v709 = vadd.f32 %v707, %v708
        %v710 = vrot.slane %v709, 2
        %v711 = vadd.f32 %v709, %v710
        %v712 = vrot.slane %v711, 1
        %v713 = vadd.f32 %v711, %v712
        %v714 = vsel %vm466, %v662, 0.0
        %v715 = vrot.slane %v714, 4
        %v716 = vadd.f32 %v714, %v715
        %v717 = vrot.slane %v716, 2
        %v718 = vadd.f32 %v716, %v717
        %v719 = vrot.slane %v718, 1
        %v720 = vadd.f32 %v718, %v719
        %v721 = vsel %vm466, %v664, 0.0
        %v722 = vrot.slane %v721, 4
        %v723 = vadd.f32 %v721, %v722
        %v724 = vrot.slane %v723, 2
        %v725 = vadd.f32 %v723, %v724
        %v726 = vrot.slane %v725, 1
        %v727 = vadd.f32 %v725, %v726
        %v728 = vsel %vm466, %v666, 0.0
        %v729 = vrot.slane %v728, 4
        %v730 = vadd.f32 %v728, %v729
        %v731 = vrot.slane %v730, 2
        %v732 = vadd.f32 %v730, %v731
        %v733 = vrot.slane %v732, 1
        %v734 = vadd.f32 %v732, %v733
        %v735 = vsel %vm466, %v668, 0.0
        %v736 = vrot.slane %v735, 4
        %v737 = vadd.f32 %v735, %v736
        %v738 = vrot.slane %v737, 2
        %v739 = vadd.f32 %v737, %v738
        %v740 = vrot.slane %v739, 1
        %v741 = vadd.f32 %v739, %v740
        %v742 = vsel %vm466, %v670, 0.0
        %v743 = vrot.slane %v742, 4
        %v744 = vadd.f32 %v742, %v743
        %v745 = vrot.slane %v744, 2
        %v746 = vadd.f32 %v744, %v745
        %v747 = vrot.slane %v746, 1
        %v748 = vadd.f32 %v746, %v747
        %v749 = vsel %vm466, %v672, 0.0
        %v750 = vrot.slane %v749, 4
        %v751 = vadd.f32 %v749, %v750
        %v752 = vrot.slane %v751, 2
        %v753 = vadd.f32 %v751, %v752
        %v754 = vrot.slane %v753, 1
        %v755 = vadd.f32 %v753, %v754
        %v756 = vsel %vm466, %v674, 0.0
        %v757 = vrot.slane %v756, 4
        %v758 = vadd.f32 %v756, %v757
        %v759 = vrot.slane %v758, 2
        %v760 = vadd.f32 %v758, %v759
        %v761 = vrot.slane %v760, 1
        %v762 = vadd.f32 %v760, %v761
        %v763 = vsel %vm466, %v676, 0.0
        %v764 = vrot.slane %v763, 4
        %v765 = vadd.f32 %v763, %v764
        %v766 = vrot.slane %v765, 2
        %v767 = vadd.f32 %v765, %v766
        %v768 = vrot.slane %v767, 1
        %v769 = vadd.f32 %v767, %v768
        %v770 = vsel %vm466, %v678, 0.0
        %v771 = vrot.slane %v770, 4
        %v772 = vadd.f32 %v770, %v771
        %v773 = vrot.slane %v772, 2
        %v774 = vadd.f32 %v772, %v773
        %v775 = vrot.slane %v774, 1
        %v776 = vadd.f32 %v774, %v775
        %v777 = vsel %vm466, %v680, 0.0
        %v778 = vrot.slane %v777, 4
        %v779 = vadd.f32 %v777, %v778
        %v780 = vrot.slane %v779, 2
        %v781 = vadd.f32 %v779, %v780
        %v782 = vrot.slane %v781, 1
        %v783 = vadd.f32 %v781, %v782
        %v784 = vsel %vm466, %v682, 0.0
        %v785 = vrot.slane %v784, 4
        %v786 = vadd.f32 %v784, %v785
        %v787 = vrot.slane %v786, 2
        %v788 = vadd.f32 %v786, %v787
        %v789 = vrot.slane %v788, 1
        %v790 = vadd.f32 %v788, %v789
        %v791 = vsel %vm466, %v684, 0.0
        %v792 = vrot.slane %v791, 4
        %v793 = vadd.f32 %v791, %v792
        %v794 = vrot.slane %v793, 2
        %v795 = vadd.f32 %v793, %v794
        %v796 = vrot.slane %v795, 1
        %v797 = vadd.f32 %v795, %v796
        %v798 = vsel %vm466, %v686, 0.0
        %v799 = vrot.slane %v798, 4
        %v800 = vadd.f32 %v798, %v799
        %v801 = vrot.slane %v800, 2
        %v802 = vadd.f32 %v800, %v801
        %v803 = vrot.slane %v802, 1
        %v804 = vadd.f32 %v802, %v803
        %v805 = vsel %vm466, %v688, 0.0
        %v806 = vrot.slane %v805, 4
        %v807 = vadd.f32 %v805, %v806
        %v808 = vrot.slane %v807, 2
        %v809 = vadd.f32 %v807, %v808
        %v810 = vrot.slane %v809, 1
        %v811 = vadd.f32 %v809, %v810
        %v812 = vsel %vm466, %v690, 0.0
        %v813 = vrot.slane %v812, 4
        %v814 = vadd.f32 %v812, %v813
        %v815 = vrot.slane %v814, 2
        %v816 = vadd.f32 %v814, %v815
        %v817 = vrot.slane %v816, 1
        %v818 = vadd.f32 %v816, %v817
        %v819 = vsel %vm466, %v692, 0.0
        %v820 = vrot.slane %v819, 4
        %v821 = vadd.f32 %v819, %v820
        %v822 = vrot.slane %v821, 2
        %v823 = vadd.f32 %v821, %v822
        %v824 = vrot.slane %v823, 1
        %v825 = vadd.f32 %v823, %v824
        %v826 = vsel %vm466, %v694, 0.0
        %v827 = vrot.slane %v826, 4
        %v828 = vadd.f32 %v826, %v827
        %v829 = vrot.slane %v828, 2
        %v830 = vadd.f32 %v828, %v829
        %v831 = vrot.slane %v830, 1
        %v832 = vadd.f32 %v830, %v831
        %v833 = vsel %vm466, %v696, 0.0
        %v834 = vrot.slane %v833, 4
        %v835 = vadd.f32 %v833, %v834
        %v836 = vrot.slane %v835, 2
        %v837 = vadd.f32 %v835, %v836
        %v838 = vrot.slane %v837, 1
        %v839 = vadd.f32 %v837, %v838
        %v840 = vsel %vm466, %v698, 0.0
        %v841 = vrot.slane %v840, 4
        %v842 = vadd.f32 %v840, %v841
        %v843 = vrot.slane %v842, 2
        %v844 = vadd.f32 %v842, %v843
        %v845 = vrot.slane %v844, 1
        %v846 = vadd.f32 %v844, %v845
        %v847 = vsel %vm466, %v700, 0.0
        %v848 = vrot.slane %v847, 4
        %v849 = vadd.f32 %v847, %v848
        %v850 = vrot.slane %v849, 2
        %v851 = vadd.f32 %v849, %v850
        %v852 = vrot.slane %v851, 1
        %v853 = vadd.f32 %v851, %v852
        %v854 = vsel %vm466, %v702, 0.0
        %v855 = vrot.slane %v854, 4
        %v856 = vadd.f32 %v854, %v855
        %v857 = vrot.slane %v856, 2
        %v858 = vadd.f32 %v856, %v857
        %v859 = vrot.slane %v858, 1
        %v860 = vadd.f32 %v858, %v859
        %v861 = vsel %vm466, %v704, 0.0
        %v862 = vrot.slane %v861, 4
        %v863 = vadd.f32 %v861, %v862
        %v864 = vrot.slane %v863, 2
        %v865 = vadd.f32 %v863, %v864
        %v866 = vrot.slane %v865, 1
        %v867 = vadd.f32 %v865, %v866
        %v868 = vsel %vm466, %v706, 0.0
        %v869 = vrot.slane %v868, 4
        %v870 = vadd.f32 %v868, %v869
        %v871 = vrot.slane %v870, 2
        %v872 = vadd.f32 %v870, %v871
        %v873 = vrot.slane %v872, 1
        %v874 = vadd.f32 %v872, %v873
        %v875 = vrcp.pop %v713
        %v876 = vrcp.pop %v720
        %v877 = vrcp.pop %v727
        %v878 = vrcp.pop %v734
        %v879 = vrcp.pop %v741
        %v880 = vrcp.pop %v748
        %v881 = vrcp.pop %v755
        %v882 = vrcp.pop %v762
        %v883 = vrcp.pop %v769
        %v884 = vrcp.pop %v776
        %v885 = vrcp.pop %v783
        %v886 = vrcp.pop %v790
        %v887 = vrcp.pop %v797
        %v888 = vrcp.pop %v804
        %v889 = vrcp.pop %v811
        %v890 = vrcp.pop %v818
        %v891 = vrcp.pop %v825
        %v892 = vrcp.pop %v832
        %v893 = vrcp.pop %v839
        %v894 = vrcp.pop %v846
        %v895 = vrcp.pop %v853
        %v896 = vrcp.pop %v860
        %v897 = vrcp.pop %v867
        %v898 = vrcp.pop %v874
        %v899 = vmul.f32 %v660, %v875
        %v900 = vmul.f32 %v662, %v876
        %v901 = vmul.f32 %v664, %v877
        %v902 = vmul.f32 %v666, %v878
        %v903 = vmul.f32 %v668, %v879
        %v904 = vmul.f32 %v670, %v880
        %v905 = vmul.f32 %v672, %v881
        %v906 = vmul.f32 %v674, %v882
        %v907 = vmul.f32 %v676, %v883
        %v908 = vmul.f32 %v678, %v884
        %v909 = vmul.f32 %v680, %v885
        %v910 = vmul.f32 %v682, %v886
        %v911 = vmul.f32 %v684, %v887
        %v912 = vmul.f32 %v686, %v888
        %v913 = vmul.f32 %v688, %v889
        %v914 = vmul.f32 %v690, %v890
        %v915 = vmul.f32 %v692, %v891
        %v916 = vmul.f32 %v694, %v892
        %v917 = vmul.f32 %v696, %v893
        %v918 = vmul.f32 %v698, %v894
        %v919 = vmul.f32 %v700, %v895
        %v920 = vmul.f32 %v702, %v896
        %v921 = vmul.f32 %v704, %v897
        %v922 = vmul.f32 %v706, %v898
        %v923 = vlaneseq
        %v924 = vshrl.u32 %v923, 7
        %v925 = vsub.s32 0, %v924
        %v926 = vrot.slane %v222, %v925
        %v931 = vunpack.c.l.b16 %v201
        %v932 = vunpack.c.l.b16 %v202
        %v933 = vunpack.c.l.b16 %v203
        %v934 = vunpack.c.l.b16 %v204
        %v935 = vpack.c.b16 %v932, %v931
        %v936 = vpack.c.b16 %v934, %v933
        %939 = vmatprep.subr.bf16.mxu0 0
        %940 = vmatpush1.bf16.msra.mxu0 %v935
        %941 = vmatprep.subr.bf16.mxu0 0
        %942 = vmatpush1.bf16.msra.mxu0 %v936
        %943 = vmatprep.subr.bf16.mxu0 0
        %944 = vmatpush1.bf16.msra.mxu0 0
        %945 = vmatprep.subr.bf16.mxu0 0
        %946 = vmatpush1.bf16.msra.mxu0 0
        %947 = vmatprep.subr.bf16.mxu0 0
        %948 = vmatpush1.bf16.msra.mxu0 0
        %949 = vmatprep.subr.bf16.mxu0 0
        %950 = vmatpush1.bf16.msra.mxu0 0
        %951 = vmatprep.subr.bf16.mxu0 0
        %952 = vmatpush1.bf16.msra.mxu0 0
        %953 = vmatprep.subr.bf16.mxu0 0
        %954 = vmatpush1.bf16.msra.mxu0 0
        %955 = vmatprep.subr.bf16.mxu0 0
        %956 = vmatpush1.bf16.msra.mxu0 0
        %957 = vmatprep.subr.bf16.mxu0 0
        %958 = vmatpush1.bf16.msra.mxu0 0
        %959 = vmatprep.subr.bf16.mxu0 0
        %960 = vmatpush1.bf16.msra.mxu0 0
        %961 = vmatprep.subr.bf16.mxu0 0
        %962 = vmatpush1.bf16.msra.mxu0 0
        %963 = vmatprep.subr.bf16.mxu0 0
        %964 = vmatpush1.bf16.msra.mxu0 0
        %965 = vmatprep.subr.bf16.mxu0 0
        %966 = vmatpush1.bf16.msra.mxu0 0
        %967 = vmatprep.subr.bf16.mxu0 0
        %968 = vmatpush1.bf16.msra.mxu0 0
        %969 = vmatprep.subr.bf16.mxu0 0
        %970 = vmatpush1.bf16.msra.mxu0 0
        %971 = vmatprep.mubr.bf16.mxu0 0
        %972 = vmatmul.mubr.bf16.gmra.mrb[0].mxu0 %v302
        %v973 = vpop.f32.mrb[0].mxu0
        %v974 = vadd.f32 %v926, %v973
        %v975 = vpop.f32.mrb[0].mxu0
        %v976 = vpop.f32.mrb[0].mxu0
        %v977 = vadd.f32 %v926, %v976
        %v978 = vpop.f32.mrb[0].mxu0
        %979 = vmatprep.mubr.bf16.mxu0 0
        %980 = vmatmul.mubr.bf16.gmra.mrb[0].mxu0 %v305
        %v981 = vpop.f32.mrb[0].mxu0
        %v982 = vadd.f32 %v926, %v981
        %v983 = vpop.f32.mrb[0].mxu0
        %v984 = vpop.f32.mrb[0].mxu0
        %v985 = vadd.f32 %v926, %v984
        %v986 = vpop.f32.mrb[0].mxu0
        %987 = vmatprep.mubr.bf16.mxu0 0
        %988 = vmatmul.mubr.bf16.gmra.mrb[0].mxu0 %v308
        %v989 = vpop.f32.mrb[0].mxu0
        %v990 = vadd.f32 %v926, %v989
        %v991 = vpop.f32.mrb[0].mxu0
        %v992 = vpop.f32.mrb[0].mxu0
        %v993 = vadd.f32 %v926, %v992
        %v994 = vpop.f32.mrb[0].mxu0
        %995 = vmatprep.mubr.bf16.mxu0 0
        %996 = vmatmul.mubr.bf16.gmra.mrb[0].mxu0 %v311
        %v997 = vpop.f32.mrb[0].mxu0
        %v998 = vadd.f32 %v926, %v997
        %v999 = vpop.f32.mrb[0].mxu0
        %v1000 = vpop.f32.mrb[0].mxu0
        %v1001 = vadd.f32 %v926, %v1000
        %v1002 = vpop.f32.mrb[0].mxu0
        %1003 = vmatprep.mubr.bf16.mxu0 0
        %1004 = vmatmul.mubr.bf16.gmra.mrb[0].mxu0 %v314
        %v1005 = vpop.f32.mrb[0].mxu0
        %v1006 = vadd.f32 %v926, %v1005
        %v1007 = vpop.f32.mrb[0].mxu0
        %v1008 = vpop.f32.mrb[0].mxu0
        %v1009 = vadd.f32 %v926, %v1008
        %v1010 = vpop.f32.mrb[0].mxu0
        %1011 = vmatprep.mubr.bf16.mxu0 0
        %1012 = vmatmul.mubr.bf16.gmra.mrb[0].mxu0 %v317
        %v1013 = vpop.f32.mrb[0].mxu0
        %v1014 = vadd.f32 %v926, %v1013
        %v1015 = vpop.f32.mrb[0].mxu0
        %v1016 = vpop.f32.mrb[0].mxu0
        %v1017 = vadd.f32 %v926, %v1016
        %v1018 = vpop.f32.mrb[0].mxu0
        %1019 = vmatprep.mubr.bf16.mxu0 0
        %1020 = vmatmul.mubr.bf16.gmra.mrb[0].mxu0 %v320
        %v1021 = vpop.f32.mrb[0].mxu0
        %v1022 = vadd.f32 %v926, %v1021
        %v1023 = vpop.f32.mrb[0].mxu0
        %v1024 = vpop.f32.mrb[0].mxu0
        %v1025 = vadd.f32 %v926, %v1024
        %v1026 = vpop.f32.mrb[0].mxu0
        %1027 = vmatprep.mubr.bf16.mxu0 0
        %1028 = vmatmul.mubr.bf16.gmra.mrb[0].mxu0 %v323
        %v1029 = vpop.f32.mrb[0].mxu0
        %v1030 = vadd.f32 %v926, %v1029
        %v1031 = vpop.f32.mrb[0].mxu0
        %v1032 = vpop.f32.mrb[0].mxu0
        %v1033 = vadd.f32 %v926, %v1032
        %v1034 = vpop.f32.mrb[0].mxu0
        %1035 = vmatprep.mubr.bf16.mxu0 0
        %1036 = vmatmul.mubr.bf16.gmra.mrb[0].mxu0 %v326
        %v1037 = vpop.f32.mrb[0].mxu0
        %v1038 = vadd.f32 %v926, %v1037
        %v1039 = vpop.f32.mrb[0].mxu0
        %v1040 = vpop.f32.mrb[0].mxu0
        %v1041 = vadd.f32 %v926, %v1040
        %v1042 = vpop.f32.mrb[0].mxu0
        %1043 = vmatprep.mubr.bf16.mxu0 0
        %1044 = vmatmul.mubr.bf16.gmra.mrb[0].mxu0 %v329
        %v1045 = vpop.f32.mrb[0].mxu0
        %v1046 = vadd.f32 %v926, %v1045
        %v1047 = vpop.f32.mrb[0].mxu0
        %v1048 = vpop.f32.mrb[0].mxu0
        %v1049 = vadd.f32 %v926, %v1048
        %v1050 = vpop.f32.mrb[0].mxu0
        %1051 = vmatprep.mubr.bf16.mxu0 0
        %1052 = vmatmul.mubr.bf16.gmra.mrb[0].mxu0 %v332
        %v1053 = vpop.f32.mrb[0].mxu0
        %v1054 = vadd.f32 %v926, %v1053
        %v1055 = vpop.f32.mrb[0].mxu0
        %v1056 = vpop.f32.mrb[0].mxu0
        %v1057 = vadd.f32 %v926, %v1056
        %v1058 = vpop.f32.mrb[0].mxu0
        %1059 = vmatprep.mubr.bf16.mxu0 0
        %1060 = vmatmul.mubr.bf16.gmra.mrb[0].mxu0 %v335
        %v1061 = vpop.f32.mrb[0].mxu0
        %v1062 = vadd.f32 %v926, %v1061
        %v1063 = vpop.f32.mrb[0].mxu0
        %v1064 = vpop.f32.mrb[0].mxu0
        %v1065 = vadd.f32 %v926, %v1064
        %v1066 = vpop.f32.mrb[0].mxu0
        %1067 = vdwg.mxu0
        %1092 = vrot.lane.b32.xlu0 %v899, 8
        %v1093 = vpop.permute.xlu0 %1092
        %1094 = vrot.lane.b32.xlu0 %v900, 8
        %v1095 = vpop.permute.xlu0 %1094
        %1096 = vrot.lane.b32.xlu0 %v901, 8
        %v1097 = vpop.permute.xlu0 %1096
        %1098 = vrot.lane.b32.xlu0 %v902, 8
        %v1099 = vpop.permute.xlu0 %1098
        %1100 = vrot.lane.b32.xlu0 %v903, 8
        %v1101 = vpop.permute.xlu0 %1100
        %1102 = vrot.lane.b32.xlu0 %v904, 8
        %v1103 = vpop.permute.xlu0 %1102
        %1104 = vrot.lane.b32.xlu0 %v905, 8
        %v1105 = vpop.permute.xlu0 %1104
        %1106 = vrot.lane.b32.xlu0 %v906, 8
        %v1107 = vpop.permute.xlu0 %1106
        %1108 = vrot.lane.b32.xlu0 %v907, 8
        %v1109 = vpop.permute.xlu0 %1108
        %1110 = vrot.lane.b32.xlu0 %v908, 8
        %v1111 = vpop.permute.xlu0 %1110
        %1112 = vrot.lane.b32.xlu0 %v909, 8
        %v1113 = vpop.permute.xlu0 %1112
        %1114 = vrot.lane.b32.xlu0 %v910, 8
        %v1115 = vpop.permute.xlu0 %1114
        %1116 = vrot.lane.b32.xlu0 %v911, 8
        %v1117 = vpop.permute.xlu0 %1116
        %1118 = vrot.lane.b32.xlu0 %v912, 8
        %v1119 = vpop.permute.xlu0 %1118
        %1120 = vrot.lane.b32.xlu0 %v913, 8
        %v1121 = vpop.permute.xlu0 %1120
        %1122 = vrot.lane.b32.xlu0 %v914, 8
        %v1123 = vpop.permute.xlu0 %1122
        %1124 = vrot.lane.b32.xlu0 %v915, 8
        %v1125 = vpop.permute.xlu0 %1124
        %1126 = vrot.lane.b32.xlu0 %v916, 8
        %v1127 = vpop.permute.xlu0 %1126
        %1128 = vrot.lane.b32.xlu0 %v917, 8
        %v1129 = vpop.permute.xlu0 %1128
        %1130 = vrot.lane.b32.xlu0 %v918, 8
        %v1131 = vpop.permute.xlu0 %1130
        %1132 = vrot.lane.b32.xlu0 %v919, 8
        %v1133 = vpop.permute.xlu0 %1132
        %1134 = vrot.lane.b32.xlu0 %v920, 8
        %v1135 = vpop.permute.xlu0 %1134
        %1136 = vrot.lane.b32.xlu0 %v921, 8
        %v1137 = vpop.permute.xlu0 %1136
        %1138 = vrot.lane.b32.xlu0 %v922, 8
        %v1139 = vpop.permute.xlu0 %1138
        %1164 = vrot.lane.b32.xlu0 %v899, 16
        %v1165 = vpop.permute.xlu0 %1164
        %1166 = vrot.lane.b32.xlu0 %v900, 16
        %v1167 = vpop.permute.xlu0 %1166
        %1168 = vrot.lane.b32.xlu0 %v901, 16
        %v1169 = vpop.permute.xlu0 %1168
        %1170 = vrot.lane.b32.xlu0 %v902, 16
        %v1171 = vpop.permute.xlu0 %1170
        %1172 = vrot.lane.b32.xlu0 %v903, 16
        %v1173 = vpop.permute.xlu0 %1172
        %1174 = vrot.lane.b32.xlu0 %v904, 16
        %v1175 = vpop.permute.xlu0 %1174
        %1176 = vrot.lane.b32.xlu0 %v905, 16
        %v1177 = vpop.permute.xlu0 %1176
        %1178 = vrot.lane.b32.xlu0 %v906, 16
        %v1179 = vpop.permute.xlu0 %1178
        %1180 = vrot.lane.b32.xlu0 %v907, 16
        %v1181 = vpop.permute.xlu0 %1180
        %1182 = vrot.lane.b32.xlu0 %v908, 16
        %v1183 = vpop.permute.xlu0 %1182
        %1184 = vrot.lane.b32.xlu0 %v909, 16
        %v1185 = vpop.permute.xlu0 %1184
        %1186 = vrot.lane.b32.xlu0 %v910, 16
        %v1187 = vpop.permute.xlu0 %1186
        %1188 = vrot.lane.b32.xlu0 %v911, 16
        %v1189 = vpop.permute.xlu0 %1188
        %1190 = vrot.lane.b32.xlu0 %v912, 16
        %v1191 = vpop.permute.xlu0 %1190
        %1192 = vrot.lane.b32.xlu0 %v913, 16
        %v1193 = vpop.permute.xlu0 %1192
        %1194 = vrot.lane.b32.xlu0 %v914, 16
        %v1195 = vpop.permute.xlu0 %1194
        %1196 = vrot.lane.b32.xlu0 %v915, 16
        %v1197 = vpop.permute.xlu0 %1196
        %1198 = vrot.lane.b32.xlu0 %v916, 16
        %v1199 = vpop.permute.xlu0 %1198
        %1200 = vrot.lane.b32.xlu0 %v917, 16
        %v1201 = vpop.permute.xlu0 %1200
        %1202 = vrot.lane.b32.xlu0 %v918, 16
        %v1203 = vpop.permute.xlu0 %1202
        %1204 = vrot.lane.b32.xlu0 %v919, 16
        %v1205 = vpop.permute.xlu0 %1204
        %1206 = vrot.lane.b32.xlu0 %v920, 16
        %v1207 = vpop.permute.xlu0 %1206
        %1208 = vrot.lane.b32.xlu0 %v921, 16
        %v1209 = vpop.permute.xlu0 %1208
        %1210 = vrot.lane.b32.xlu0 %v922, 16
        %v1211 = vpop.permute.xlu0 %1210
        %1236 = vrot.lane.b32.xlu0 %v899, 24
        %v1237 = vpop.permute.xlu0 %1236
        %1238 = vrot.lane.b32.xlu0 %v900, 24
        %v1239 = vpop.permute.xlu0 %1238
        %1240 = vrot.lane.b32.xlu0 %v901, 24
        %v1241 = vpop.permute.xlu0 %1240
        %1242 = vrot.lane.b32.xlu0 %v902, 24
        %v1243 = vpop.permute.xlu0 %1242
        %1244 = vrot.lane.b32.xlu0 %v903, 24
        %v1245 = vpop.permute.xlu0 %1244
        %1246 = vrot.lane.b32.xlu0 %v904, 24
        %v1247 = vpop.permute.xlu0 %1246
        %1248 = vrot.lane.b32.xlu0 %v905, 24
        %v1249 = vpop.permute.xlu0 %1248
        %1250 = vrot.lane.b32.xlu0 %v906, 24
        %v1251 = vpop.permute.xlu0 %1250
        %1252 = vrot.lane.b32.xlu0 %v907, 24
        %v1253 = vpop.permute.xlu0 %1252
        %1254 = vrot.lane.b32.xlu0 %v908, 24
        %v1255 = vpop.permute.xlu0 %1254
        %1256 = vrot.lane.b32.xlu0 %v909, 24
        %v1257 = vpop.permute.xlu0 %1256
        %1258 = vrot.lane.b32.xlu0 %v910, 24
        %v1259 = vpop.permute.xlu0 %1258
        %1260 = vrot.lane.b32.xlu0 %v911, 24
        %v1261 = vpop.permute.xlu0 %1260
        %1262 = vrot.lane.b32.xlu0 %v912, 24
        %v1263 = vpop.permute.xlu0 %1262
        %1264 = vrot.lane.b32.xlu0 %v913, 24
        %v1265 = vpop.permute.xlu0 %1264
        %1266 = vrot.lane.b32.xlu0 %v914, 24
        %v1267 = vpop.permute.xlu0 %1266
        %1268 = vrot.lane.b32.xlu0 %v915, 24
        %v1269 = vpop.permute.xlu0 %1268
        %1270 = vrot.lane.b32.xlu0 %v916, 24
        %v1271 = vpop.permute.xlu0 %1270
        %1272 = vrot.lane.b32.xlu0 %v917, 24
        %v1273 = vpop.permute.xlu0 %1272
        %1274 = vrot.lane.b32.xlu0 %v918, 24
        %v1275 = vpop.permute.xlu0 %1274
        %1276 = vrot.lane.b32.xlu0 %v919, 24
        %v1277 = vpop.permute.xlu0 %1276
        %1278 = vrot.lane.b32.xlu0 %v920, 24
        %v1279 = vpop.permute.xlu0 %1278
        %1280 = vrot.lane.b32.xlu0 %v921, 24
        %v1281 = vpop.permute.xlu0 %1280
        %1282 = vrot.lane.b32.xlu0 %v922, 24
        %v1283 = vpop.permute.xlu0 %1282
        %1308 = vrot.lane.b32.xlu0 %v899, 32
        %v1309 = vpop.permute.xlu0 %1308
        %1310 = vrot.lane.b32.xlu0 %v900, 32
        %v1311 = vpop.permute.xlu0 %1310
        %1312 = vrot.lane.b32.xlu0 %v901, 32
        %v1313 = vpop.permute.xlu0 %1312
        %1314 = vrot.lane.b32.xlu0 %v902, 32
        %v1315 = vpop.permute.xlu0 %1314
        %1316 = vrot.lane.b32.xlu0 %v903, 32
        %v1317 = vpop.permute.xlu0 %1316
        %1318 = vrot.lane.b32.xlu0 %v904, 32
        %v1319 = vpop.permute.xlu0 %1318
        %1320 = vrot.lane.b32.xlu0 %v905, 32
        %v1321 = vpop.permute.xlu0 %1320
        %1322 = vrot.lane.b32.xlu0 %v906, 32
        %v1323 = vpop.permute.xlu0 %1322
        %1324 = vrot.lane.b32.xlu0 %v907, 32
        %v1325 = vpop.permute.xlu0 %1324
        %1326 = vrot.lane.b32.xlu0 %v908, 32
        %v1327 = vpop.permute.xlu0 %1326
        %1328 = vrot.lane.b32.xlu0 %v909, 32
        %v1329 = vpop.permute.xlu0 %1328
        %1330 = vrot.lane.b32.xlu0 %v910, 32
        %v1331 = vpop.permute.xlu0 %1330
        %1332 = vrot.lane.b32.xlu0 %v911, 32
        %v1333 = vpop.permute.xlu0 %1332
        %1334 = vrot.lane.b32.xlu0 %v912, 32
        %v1335 = vpop.permute.xlu0 %1334
        %1336 = vrot.lane.b32.xlu0 %v913, 32
        %v1337 = vpop.permute.xlu0 %1336
        %1338 = vrot.lane.b32.xlu0 %v914, 32
        %v1339 = vpop.permute.xlu0 %1338
        %1340 = vrot.lane.b32.xlu0 %v915, 32
        %v1341 = vpop.permute.xlu0 %1340
        %1342 = vrot.lane.b32.xlu0 %v916, 32
        %v1343 = vpop.permute.xlu0 %1342
        %1344 = vrot.lane.b32.xlu0 %v917, 32
        %v1345 = vpop.permute.xlu0 %1344
        %1346 = vrot.lane.b32.xlu0 %v918, 32
        %v1347 = vpop.permute.xlu0 %1346
        %1348 = vrot.lane.b32.xlu0 %v919, 32
        %v1349 = vpop.permute.xlu0 %1348
        %1350 = vrot.lane.b32.xlu0 %v920, 32
        %v1351 = vpop.permute.xlu0 %1350
        %1352 = vrot.lane.b32.xlu0 %v921, 32
        %v1353 = vpop.permute.xlu0 %1352
        %1354 = vrot.lane.b32.xlu0 %v922, 32
        %v1355 = vpop.permute.xlu0 %1354
        %1380 = vrot.lane.b32.xlu0 %v899, 40
        %v1381 = vpop.permute.xlu0 %1380
        %1382 = vrot.lane.b32.xlu0 %v900, 40
        %v1383 = vpop.permute.xlu0 %1382
        %1384 = vrot.lane.b32.xlu0 %v901, 40
        %v1385 = vpop.permute.xlu0 %1384
        %1386 = vrot.lane.b32.xlu0 %v902, 40
        %v1387 = vpop.permute.xlu0 %1386
        %1388 = vrot.lane.b32.xlu0 %v903, 40
        %v1389 = vpop.permute.xlu0 %1388
        %1390 = vrot.lane.b32.xlu0 %v904, 40
        %v1391 = vpop.permute.xlu0 %1390
        %1392 = vrot.lane.b32.xlu0 %v905, 40
        %v1393 = vpop.permute.xlu0 %1392
        %1394 = vrot.lane.b32.xlu0 %v906, 40
        %v1395 = vpop.permute.xlu0 %1394
        %1396 = vrot.lane.b32.xlu0 %v907, 40
        %v1397 = vpop.permute.xlu0 %1396
        %1398 = vrot.lane.b32.xlu0 %v908, 40
        %v1399 = vpop.permute.xlu0 %1398
        %1400 = vrot.lane.b32.xlu0 %v909, 40
        %v1401 = vpop.permute.xlu0 %1400
        %1402 = vrot.lane.b32.xlu0 %v910, 40
        %v1403 = vpop.permute.xlu0 %1402
        %1404 = vrot.lane.b32.xlu0 %v911, 40
        %v1405 = vpop.permute.xlu0 %1404
        %1406 = vrot.lane.b32.xlu0 %v912, 40
        %v1407 = vpop.permute.xlu0 %1406
        %1408 = vrot.lane.b32.xlu0 %v913, 40
        %v1409 = vpop.permute.xlu0 %1408
        %1410 = vrot.lane.b32.xlu0 %v914, 40
        %v1411 = vpop.permute.xlu0 %1410
        %1412 = vrot.lane.b32.xlu0 %v915, 40
        %v1413 = vpop.permute.xlu0 %1412
        %1414 = vrot.lane.b32.xlu0 %v916, 40
        %v1415 = vpop.permute.xlu0 %1414
        %1416 = vrot.lane.b32.xlu0 %v917, 40
        %v1417 = vpop.permute.xlu0 %1416
        %1418 = vrot.lane.b32.xlu0 %v918, 40
        %v1419 = vpop.permute.xlu0 %1418
        %1420 = vrot.lane.b32.xlu0 %v919, 40
        %v1421 = vpop.permute.xlu0 %1420
        %1422 = vrot.lane.b32.xlu0 %v920, 40
        %v1423 = vpop.permute.xlu0 %1422
        %1424 = vrot.lane.b32.xlu0 %v921, 40
        %v1425 = vpop.permute.xlu0 %1424
        %1426 = vrot.lane.b32.xlu0 %v922, 40
        %v1427 = vpop.permute.xlu0 %1426
        %1452 = vrot.lane.b32.xlu0 %v899, 48
        %v1453 = vpop.permute.xlu0 %1452
        %1454 = vrot.lane.b32.xlu0 %v900, 48
        %v1455 = vpop.permute.xlu0 %1454
        %1456 = vrot.lane.b32.xlu0 %v901, 48
        %v1457 = vpop.permute.xlu0 %1456
        %1458 = vrot.lane.b32.xlu0 %v902, 48
        %v1459 = vpop.permute.xlu0 %1458
        %1460 = vrot.lane.b32.xlu0 %v903, 48
        %v1461 = vpop.permute.xlu0 %1460
        %1462 = vrot.lane.b32.xlu0 %v904, 48
        %v1463 = vpop.permute.xlu0 %1462
        %1464 = vrot.lane.b32.xlu0 %v905, 48
        %v1465 = vpop.permute.xlu0 %1464
        %1466 = vrot.lane.b32.xlu0 %v906, 48
        %v1467 = vpop.permute.xlu0 %1466
        %1468 = vrot.lane.b32.xlu0 %v907, 48
        %v1469 = vpop.permute.xlu0 %1468
        %1470 = vrot.lane.b32.xlu0 %v908, 48
        %v1471 = vpop.permute.xlu0 %1470
        %1472 = vrot.lane.b32.xlu0 %v909, 48
        %v1473 = vpop.permute.xlu0 %1472
        %1474 = vrot.lane.b32.xlu0 %v910, 48
        %v1475 = vpop.permute.xlu0 %1474
        %1476 = vrot.lane.b32.xlu0 %v911, 48
        %v1477 = vpop.permute.xlu0 %1476
        %1478 = vrot.lane.b32.xlu0 %v912, 48
        %v1479 = vpop.permute.xlu0 %1478
        %1480 = vrot.lane.b32.xlu0 %v913, 48
        %v1481 = vpop.permute.xlu0 %1480
        %1482 = vrot.lane.b32.xlu0 %v914, 48
        %v1483 = vpop.permute.xlu0 %1482
        %1484 = vrot.lane.b32.xlu0 %v915, 48
        %v1485 = vpop.permute.xlu0 %1484
        %1486 = vrot.lane.b32.xlu0 %v916, 48
        %v1487 = vpop.permute.xlu0 %1486
        %1488 = vrot.lane.b32.xlu0 %v917, 48
        %v1489 = vpop.permute.xlu0 %1488
        %1490 = vrot.lane.b32.xlu0 %v918, 48
        %v1491 = vpop.permute.xlu0 %1490
        %1492 = vrot.lane.b32.xlu0 %v919, 48
        %v1493 = vpop.permute.xlu0 %1492
        %1494 = vrot.lane.b32.xlu0 %v920, 48
        %v1495 = vpop.permute.xlu0 %1494
        %1496 = vrot.lane.b32.xlu0 %v921, 48
        %v1497 = vpop.permute.xlu0 %1496
        %1498 = vrot.lane.b32.xlu0 %v922, 48
        %v1499 = vpop.permute.xlu0 %1498
        %1524 = vrot.lane.b32.xlu0 %v899, 56
        %v1525 = vpop.permute.xlu0 %1524
        %1526 = vrot.lane.b32.xlu0 %v900, 56
        %v1527 = vpop.permute.xlu0 %1526
        %1528 = vrot.lane.b32.xlu0 %v901, 56
        %v1529 = vpop.permute.xlu0 %1528
        %1530 = vrot.lane.b32.xlu0 %v902, 56
        %v1531 = vpop.permute.xlu0 %1530
        %1532 = vrot.lane.b32.xlu0 %v903, 56
        %v1533 = vpop.permute.xlu0 %1532
        %1534 = vrot.lane.b32.xlu0 %v904, 56
        %v1535 = vpop.permute.xlu0 %1534
        %1536 = vrot.lane.b32.xlu0 %v905, 56
        %v1537 = vpop.permute.xlu0 %1536
        %1538 = vrot.lane.b32.xlu0 %v906, 56
        %v1539 = vpop.permute.xlu0 %1538
        %1540 = vrot.lane.b32.xlu0 %v907, 56
        %v1541 = vpop.permute.xlu0 %1540
        %1542 = vrot.lane.b32.xlu0 %v908, 56
        %v1543 = vpop.permute.xlu0 %1542
        %1544 = vrot.lane.b32.xlu0 %v909, 56
        %v1545 = vpop.permute.xlu0 %1544
        %1546 = vrot.lane.b32.xlu0 %v910, 56
        %v1547 = vpop.permute.xlu0 %1546
        %1548 = vrot.lane.b32.xlu0 %v911, 56
        %v1549 = vpop.permute.xlu0 %1548
        %1550 = vrot.lane.b32.xlu0 %v912, 56
        %v1551 = vpop.permute.xlu0 %1550
        %1552 = vrot.lane.b32.xlu0 %v913, 56
        %v1553 = vpop.permute.xlu0 %1552
        %1554 = vrot.lane.b32.xlu0 %v914, 56
        %v1555 = vpop.permute.xlu0 %1554
        %1556 = vrot.lane.b32.xlu0 %v915, 56
        %v1557 = vpop.permute.xlu0 %1556
        %1558 = vrot.lane.b32.xlu0 %v916, 56
        %v1559 = vpop.permute.xlu0 %1558
        %1560 = vrot.lane.b32.xlu0 %v917, 56
        %v1561 = vpop.permute.xlu0 %1560
        %1562 = vrot.lane.b32.xlu0 %v918, 56
        %v1563 = vpop.permute.xlu0 %1562
        %1564 = vrot.lane.b32.xlu0 %v919, 56
        %v1565 = vpop.permute.xlu0 %1564
        %1566 = vrot.lane.b32.xlu0 %v920, 56
        %v1567 = vpop.permute.xlu0 %1566
        %1568 = vrot.lane.b32.xlu0 %v921, 56
        %v1569 = vpop.permute.xlu0 %1568
        %1570 = vrot.lane.b32.xlu0 %v922, 56
        %v1571 = vpop.permute.xlu0 %1570
        %1596 = vrot.lane.b32.xlu0 %v899, 64
        %v1597 = vpop.permute.xlu0 %1596
        %1598 = vrot.lane.b32.xlu0 %v900, 64
        %v1599 = vpop.permute.xlu0 %1598
        %1600 = vrot.lane.b32.xlu0 %v901, 64
        %v1601 = vpop.permute.xlu0 %1600
        %1602 = vrot.lane.b32.xlu0 %v902, 64
        %v1603 = vpop.permute.xlu0 %1602
        %1604 = vrot.lane.b32.xlu0 %v903, 64
        %v1605 = vpop.permute.xlu0 %1604
        %1606 = vrot.lane.b32.xlu0 %v904, 64
        %v1607 = vpop.permute.xlu0 %1606
        %1608 = vrot.lane.b32.xlu0 %v905, 64
        %v1609 = vpop.permute.xlu0 %1608
        %1610 = vrot.lane.b32.xlu0 %v906, 64
        %v1611 = vpop.permute.xlu0 %1610
        %1612 = vrot.lane.b32.xlu0 %v907, 64
        %v1613 = vpop.permute.xlu0 %1612
        %1614 = vrot.lane.b32.xlu0 %v908, 64
        %v1615 = vpop.permute.xlu0 %1614
        %1616 = vrot.lane.b32.xlu0 %v909, 64
        %v1617 = vpop.permute.xlu0 %1616
        %1618 = vrot.lane.b32.xlu0 %v910, 64
        %v1619 = vpop.permute.xlu0 %1618
        %1620 = vrot.lane.b32.xlu0 %v911, 64
        %v1621 = vpop.permute.xlu0 %1620
        %1622 = vrot.lane.b32.xlu0 %v912, 64
        %v1623 = vpop.permute.xlu0 %1622
        %1624 = vrot.lane.b32.xlu0 %v913, 64
        %v1625 = vpop.permute.xlu0 %1624
        %1626 = vrot.lane.b32.xlu0 %v914, 64
        %v1627 = vpop.permute.xlu0 %1626
        %1628 = vrot.lane.b32.xlu0 %v915, 64
        %v1629 = vpop.permute.xlu0 %1628
        %1630 = vrot.lane.b32.xlu0 %v916, 64
        %v1631 = vpop.permute.xlu0 %1630
        %1632 = vrot.lane.b32.xlu0 %v917, 64
        %v1633 = vpop.permute.xlu0 %1632
        %1634 = vrot.lane.b32.xlu0 %v918, 64
        %v1635 = vpop.permute.xlu0 %1634
        %1636 = vrot.lane.b32.xlu0 %v919, 64
        %v1637 = vpop.permute.xlu0 %1636
        %1638 = vrot.lane.b32.xlu0 %v920, 64
        %v1639 = vpop.permute.xlu0 %1638
        %1640 = vrot.lane.b32.xlu0 %v921, 64
        %v1641 = vpop.permute.xlu0 %1640
        %1642 = vrot.lane.b32.xlu0 %v922, 64
        %v1643 = vpop.permute.xlu0 %1642
        %1668 = vrot.lane.b32.xlu0 %v899, 72
        %v1669 = vpop.permute.xlu0 %1668
        %1670 = vrot.lane.b32.xlu0 %v900, 72
        %v1671 = vpop.permute.xlu0 %1670
        %1672 = vrot.lane.b32.xlu0 %v901, 72
        %v1673 = vpop.permute.xlu0 %1672
        %1674 = vrot.lane.b32.xlu0 %v902, 72
        %v1675 = vpop.permute.xlu0 %1674
        %1676 = vrot.lane.b32.xlu0 %v903, 72
        %v1677 = vpop.permute.xlu0 %1676
        %1678 = vrot.lane.b32.xlu0 %v904, 72
        %v1679 = vpop.permute.xlu0 %1678
        %1680 = vrot.lane.b32.xlu0 %v905, 72
        %v1681 = vpop.permute.xlu0 %1680
        %1682 = vrot.lane.b32.xlu0 %v906, 72
        %v1683 = vpop.permute.xlu0 %1682
        %1684 = vrot.lane.b32.xlu0 %v907, 72
        %v1685 = vpop.permute.xlu0 %1684
        %1686 = vrot.lane.b32.xlu0 %v908, 72
        %v1687 = vpop.permute.xlu0 %1686
        %1688 = vrot.lane.b32.xlu0 %v909, 72
        %v1689 = vpop.permute.xlu0 %1688
        %1690 = vrot.lane.b32.xlu0 %v910, 72
        %v1691 = vpop.permute.xlu0 %1690
        %1692 = vrot.lane.b32.xlu0 %v911, 72
        %v1693 = vpop.permute.xlu0 %1692
        %1694 = vrot.lane.b32.xlu0 %v912, 72
        %v1695 = vpop.permute.xlu0 %1694
        %1696 = vrot.lane.b32.xlu0 %v913, 72
        %v1697 = vpop.permute.xlu0 %1696
        %1698 = vrot.lane.b32.xlu0 %v914, 72
        %v1699 = vpop.permute.xlu0 %1698
        %1700 = vrot.lane.b32.xlu0 %v915, 72
        %v1701 = vpop.permute.xlu0 %1700
        %1702 = vrot.lane.b32.xlu0 %v916, 72
        %v1703 = vpop.permute.xlu0 %1702
        %1704 = vrot.lane.b32.xlu0 %v917, 72
        %v1705 = vpop.permute.xlu0 %1704
        %1706 = vrot.lane.b32.xlu0 %v918, 72
        %v1707 = vpop.permute.xlu0 %1706
        %1708 = vrot.lane.b32.xlu0 %v919, 72
        %v1709 = vpop.permute.xlu0 %1708
        %1710 = vrot.lane.b32.xlu0 %v920, 72
        %v1711 = vpop.permute.xlu0 %1710
        %1712 = vrot.lane.b32.xlu0 %v921, 72
        %v1713 = vpop.permute.xlu0 %1712
        %1714 = vrot.lane.b32.xlu0 %v922, 72
        %v1715 = vpop.permute.xlu0 %1714
        %1740 = vrot.lane.b32.xlu0 %v899, 80
        %v1741 = vpop.permute.xlu0 %1740
        %1742 = vrot.lane.b32.xlu0 %v900, 80
        %v1743 = vpop.permute.xlu0 %1742
        %1744 = vrot.lane.b32.xlu0 %v901, 80
        %v1745 = vpop.permute.xlu0 %1744
        %1746 = vrot.lane.b32.xlu0 %v902, 80
        %v1747 = vpop.permute.xlu0 %1746
        %1748 = vrot.lane.b32.xlu0 %v903, 80
        %v1749 = vpop.permute.xlu0 %1748
        %1750 = vrot.lane.b32.xlu0 %v904, 80
        %v1751 = vpop.permute.xlu0 %1750
        %1752 = vrot.lane.b32.xlu0 %v905, 80
        %v1753 = vpop.permute.xlu0 %1752
        %1754 = vrot.lane.b32.xlu0 %v906, 80
        %v1755 = vpop.permute.xlu0 %1754
        %1756 = vrot.lane.b32.xlu0 %v907, 80
        %v1757 = vpop.permute.xlu0 %1756
        %1758 = vrot.lane.b32.xlu0 %v908, 80
        %v1759 = vpop.permute.xlu0 %1758
        %1760 = vrot.lane.b32.xlu0 %v909, 80
        %v1761 = vpop.permute.xlu0 %1760
        %1762 = vrot.lane.b32.xlu0 %v910, 80
        %v1763 = vpop.permute.xlu0 %1762
        %1764 = vrot.lane.b32.xlu0 %v911, 80
        %v1765 = vpop.permute.xlu0 %1764
        %1766 = vrot.lane.b32.xlu0 %v912, 80
        %v1767 = vpop.permute.xlu0 %1766
        %1768 = vrot.lane.b32.xlu0 %v913, 80
        %v1769 = vpop.permute.xlu0 %1768
        %1770 = vrot.lane.b32.xlu0 %v914, 80
        %v1771 = vpop.permute.xlu0 %1770
        %1772 = vrot.lane.b32.xlu0 %v915, 80
        %v1773 = vpop.permute.xlu0 %1772
        %1774 = vrot.lane.b32.xlu0 %v916, 80
        %v1775 = vpop.permute.xlu0 %1774
        %1776 = vrot.lane.b32.xlu0 %v917, 80
        %v1777 = vpop.permute.xlu0 %1776
        %1778 = vrot.lane.b32.xlu0 %v918, 80
        %v1779 = vpop.permute.xlu0 %1778
        %1780 = vrot.lane.b32.xlu0 %v919, 80
        %v1781 = vpop.permute.xlu0 %1780
        %1782 = vrot.lane.b32.xlu0 %v920, 80
        %v1783 = vpop.permute.xlu0 %1782
        %1784 = vrot.lane.b32.xlu0 %v921, 80
        %v1785 = vpop.permute.xlu0 %1784
        %1786 = vrot.lane.b32.xlu0 %v922, 80
        %v1787 = vpop.permute.xlu0 %1786
        %1812 = vrot.lane.b32.xlu0 %v899, 88
        %v1813 = vpop.permute.xlu0 %1812
        %1814 = vrot.lane.b32.xlu0 %v900, 88
        %v1815 = vpop.permute.xlu0 %1814
        %1816 = vrot.lane.b32.xlu0 %v901, 88
        %v1817 = vpop.permute.xlu0 %1816
        %1818 = vrot.lane.b32.xlu0 %v902, 88
        %v1819 = vpop.permute.xlu0 %1818
        %1820 = vrot.lane.b32.xlu0 %v903, 88
        %v1821 = vpop.permute.xlu0 %1820
        %1822 = vrot.lane.b32.xlu0 %v904, 88
        %v1823 = vpop.permute.xlu0 %1822
        %1824 = vrot.lane.b32.xlu0 %v905, 88
        %v1825 = vpop.permute.xlu0 %1824
        %1826 = vrot.lane.b32.xlu0 %v906, 88
        %v1827 = vpop.permute.xlu0 %1826
        %1828 = vrot.lane.b32.xlu0 %v907, 88
        %v1829 = vpop.permute.xlu0 %1828
        %1830 = vrot.lane.b32.xlu0 %v908, 88
        %v1831 = vpop.permute.xlu0 %1830
        %1832 = vrot.lane.b32.xlu0 %v909, 88
        %v1833 = vpop.permute.xlu0 %1832
        %1834 = vrot.lane.b32.xlu0 %v910, 88
        %v1835 = vpop.permute.xlu0 %1834
        %1836 = vrot.lane.b32.xlu0 %v911, 88
        %v1837 = vpop.permute.xlu0 %1836
        %1838 = vrot.lane.b32.xlu0 %v912, 88
        %v1839 = vpop.permute.xlu0 %1838
        %1840 = vrot.lane.b32.xlu0 %v913, 88
        %v1841 = vpop.permute.xlu0 %1840
        %1842 = vrot.lane.b32.xlu0 %v914, 88
        %v1843 = vpop.permute.xlu0 %1842
        %1844 = vrot.lane.b32.xlu0 %v915, 88
        %v1845 = vpop.permute.xlu0 %1844
        %1846 = vrot.lane.b32.xlu0 %v916, 88
        %v1847 = vpop.permute.xlu0 %1846
        %1848 = vrot.lane.b32.xlu0 %v917, 88
        %v1849 = vpop.permute.xlu0 %1848
        %1850 = vrot.lane.b32.xlu0 %v918, 88
        %v1851 = vpop.permute.xlu0 %1850
        %1852 = vrot.lane.b32.xlu0 %v919, 88
        %v1853 = vpop.permute.xlu0 %1852
        %1854 = vrot.lane.b32.xlu0 %v920, 88
        %v1855 = vpop.permute.xlu0 %1854
        %1856 = vrot.lane.b32.xlu0 %v921, 88
        %v1857 = vpop.permute.xlu0 %1856
        %1858 = vrot.lane.b32.xlu0 %v922, 88
        %v1859 = vpop.permute.xlu0 %1858
        %1884 = vrot.lane.b32.xlu0 %v899, 96
        %v1885 = vpop.permute.xlu0 %1884
        %1886 = vrot.lane.b32.xlu0 %v900, 96
        %v1887 = vpop.permute.xlu0 %1886
        %1888 = vrot.lane.b32.xlu0 %v901, 96
        %v1889 = vpop.permute.xlu0 %1888
        %1890 = vrot.lane.b32.xlu0 %v902, 96
        %v1891 = vpop.permute.xlu0 %1890
        %1892 = vrot.lane.b32.xlu0 %v903, 96
        %v1893 = vpop.permute.xlu0 %1892
        %1894 = vrot.lane.b32.xlu0 %v904, 96
        %v1895 = vpop.permute.xlu0 %1894
        %1896 = vrot.lane.b32.xlu0 %v905, 96
        %v1897 = vpop.permute.xlu0 %1896
        %1898 = vrot.lane.b32.xlu0 %v906, 96
        %v1899 = vpop.permute.xlu0 %1898
        %1900 = vrot.lane.b32.xlu0 %v907, 96
        %v1901 = vpop.permute.xlu0 %1900
        %1902 = vrot.lane.b32.xlu0 %v908, 96
        %v1903 = vpop.permute.xlu0 %1902
        %1904 = vrot.lane.b32.xlu0 %v909, 96
        %v1905 = vpop.permute.xlu0 %1904
        %1906 = vrot.lane.b32.xlu0 %v910, 96
        %v1907 = vpop.permute.xlu0 %1906
        %1908 = vrot.lane.b32.xlu0 %v911, 96
        %v1909 = vpop.permute.xlu0 %1908
        %1910 = vrot.lane.b32.xlu0 %v912, 96
        %v1911 = vpop.permute.xlu0 %1910
        %1912 = vrot.lane.b32.xlu0 %v913, 96
        %v1913 = vpop.permute.xlu0 %1912
        %1914 = vrot.lane.b32.xlu0 %v914, 96
        %v1915 = vpop.permute.xlu0 %1914
        %1916 = vrot.lane.b32.xlu0 %v915, 96
        %v1917 = vpop.permute.xlu0 %1916
        %1918 = vrot.lane.b32.xlu0 %v916, 96
        %v1919 = vpop.permute.xlu0 %1918
        %1920 = vrot.lane.b32.xlu0 %v917, 96
        %v1921 = vpop.permute.xlu0 %1920
        %1922 = vrot.lane.b32.xlu0 %v918, 96
        %v1923 = vpop.permute.xlu0 %1922
        %1924 = vrot.lane.b32.xlu0 %v919, 96
        %v1925 = vpop.permute.xlu0 %1924
        %1926 = vrot.lane.b32.xlu0 %v920, 96
        %v1927 = vpop.permute.xlu0 %1926
        %1928 = vrot.lane.b32.xlu0 %v921, 96
        %v1929 = vpop.permute.xlu0 %1928
        %1930 = vrot.lane.b32.xlu0 %v922, 96
        %v1931 = vpop.permute.xlu0 %1930
        %1956 = vrot.lane.b32.xlu0 %v899, 104
        %v1957 = vpop.permute.xlu0 %1956
        %1958 = vrot.lane.b32.xlu0 %v900, 104
        %v1959 = vpop.permute.xlu0 %1958
        %1960 = vrot.lane.b32.xlu0 %v901, 104
        %v1961 = vpop.permute.xlu0 %1960
        %1962 = vrot.lane.b32.xlu0 %v902, 104
        %v1963 = vpop.permute.xlu0 %1962
        %1964 = vrot.lane.b32.xlu0 %v903, 104
        %v1965 = vpop.permute.xlu0 %1964
        %1966 = vrot.lane.b32.xlu0 %v904, 104
        %v1967 = vpop.permute.xlu0 %1966
        %1968 = vrot.lane.b32.xlu0 %v905, 104
        %v1969 = vpop.permute.xlu0 %1968
        %1970 = vrot.lane.b32.xlu0 %v906, 104
        %v1971 = vpop.permute.xlu0 %1970
        %1972 = vrot.lane.b32.xlu0 %v907, 104
        %v1973 = vpop.permute.xlu0 %1972
        %1974 = vrot.lane.b32.xlu0 %v908, 104
        %v1975 = vpop.permute.xlu0 %1974
        %1976 = vrot.lane.b32.xlu0 %v909, 104
        %v1977 = vpop.permute.xlu0 %1976
        %1978 = vrot.lane.b32.xlu0 %v910, 104
        %v1979 = vpop.permute.xlu0 %1978
        %1980 = vrot.lane.b32.xlu0 %v911, 104
        %v1981 = vpop.permute.xlu0 %1980
        %1982 = vrot.lane.b32.xlu0 %v912, 104
        %v1983 = vpop.permute.xlu0 %1982
        %1984 = vrot.lane.b32.xlu0 %v913, 104
        %v1985 = vpop.permute.xlu0 %1984
        %1986 = vrot.lane.b32.xlu0 %v914, 104
        %v1987 = vpop.permute.xlu0 %1986
        %1988 = vrot.lane.b32.xlu0 %v915, 104
        %v1989 = vpop.permute.xlu0 %1988
        %1990 = vrot.lane.b32.xlu0 %v916, 104
        %v1991 = vpop.permute.xlu0 %1990
        %1992 = vrot.lane.b32.xlu0 %v917, 104
        %v1993 = vpop.permute.xlu0 %1992
        %1994 = vrot.lane.b32.xlu0 %v918, 104
        %v1995 = vpop.permute.xlu0 %1994
        %1996 = vrot.lane.b32.xlu0 %v919, 104
        %v1997 = vpop.permute.xlu0 %1996
        %1998 = vrot.lane.b32.xlu0 %v920, 104
        %v1999 = vpop.permute.xlu0 %1998
        %2000 = vrot.lane.b32.xlu0 %v921, 104
        %v2001 = vpop.permute.xlu0 %2000
        %2002 = vrot.lane.b32.xlu0 %v922, 104
        %v2003 = vpop.permute.xlu0 %2002
        %2028 = vrot.lane.b32.xlu0 %v899, 112
        %v2029 = vpop.permute.xlu0 %2028
        %2030 = vrot.lane.b32.xlu0 %v900, 112
        %v2031 = vpop.permute.xlu0 %2030
        %2032 = vrot.lane.b32.xlu0 %v901, 112
        %v2033 = vpop.permute.xlu0 %2032
        %2034 = vrot.lane.b32.xlu0 %v902, 112
        %v2035 = vpop.permute.xlu0 %2034
        %2036 = vrot.lane.b32.xlu0 %v903, 112
        %v2037 = vpop.permute.xlu0 %2036
        %2038 = vrot.lane.b32.xlu0 %v904, 112
        %v2039 = vpop.permute.xlu0 %2038
        %2040 = vrot.lane.b32.xlu0 %v905, 112
        %v2041 = vpop.permute.xlu0 %2040
        %2042 = vrot.lane.b32.xlu0 %v906, 112
        %v2043 = vpop.permute.xlu0 %2042
        %2044 = vrot.lane.b32.xlu0 %v907, 112
        %v2045 = vpop.permute.xlu0 %2044
        %2046 = vrot.lane.b32.xlu0 %v908, 112
        %v2047 = vpop.permute.xlu0 %2046
        %2048 = vrot.lane.b32.xlu0 %v909, 112
        %v2049 = vpop.permute.xlu0 %2048
        %2050 = vrot.lane.b32.xlu0 %v910, 112
        %v2051 = vpop.permute.xlu0 %2050
        %2052 = vrot.lane.b32.xlu0 %v911, 112
        %v2053 = vpop.permute.xlu0 %2052
        %2054 = vrot.lane.b32.xlu0 %v912, 112
        %v2055 = vpop.permute.xlu0 %2054
        %2056 = vrot.lane.b32.xlu0 %v913, 112
        %v2057 = vpop.permute.xlu0 %2056
        %2058 = vrot.lane.b32.xlu0 %v914, 112
        %v2059 = vpop.permute.xlu0 %2058
        %2060 = vrot.lane.b32.xlu0 %v915, 112
        %v2061 = vpop.permute.xlu0 %2060
        %2062 = vrot.lane.b32.xlu0 %v916, 112
        %v2063 = vpop.permute.xlu0 %2062
        %2064 = vrot.lane.b32.xlu0 %v917, 112
        %v2065 = vpop.permute.xlu0 %2064
        %2066 = vrot.lane.b32.xlu0 %v918, 112
        %v2067 = vpop.permute.xlu0 %2066
        %2068 = vrot.lane.b32.xlu0 %v919, 112
        %v2069 = vpop.permute.xlu0 %2068
        %2070 = vrot.lane.b32.xlu0 %v920, 112
        %v2071 = vpop.permute.xlu0 %2070
        %2072 = vrot.lane.b32.xlu0 %v921, 112
        %v2073 = vpop.permute.xlu0 %2072
        %2074 = vrot.lane.b32.xlu0 %v922, 112
        %v2075 = vpop.permute.xlu0 %2074
        %2100 = vrot.lane.b32.xlu0 %v899, 120
        %v2101 = vpop.permute.xlu0 %2100
        %2102 = vrot.lane.b32.xlu0 %v900, 120
        %v2103 = vpop.permute.xlu0 %2102
        %2104 = vrot.lane.b32.xlu0 %v901, 120
        %v2105 = vpop.permute.xlu0 %2104
        %2106 = vrot.lane.b32.xlu0 %v902, 120
        %v2107 = vpop.permute.xlu0 %2106
        %2108 = vrot.lane.b32.xlu0 %v903, 120
        %v2109 = vpop.permute.xlu0 %2108
        %2110 = vrot.lane.b32.xlu0 %v904, 120
        %v2111 = vpop.permute.xlu0 %2110
        %2112 = vrot.lane.b32.xlu0 %v905, 120
        %v2113 = vpop.permute.xlu0 %2112
        %2114 = vrot.lane.b32.xlu0 %v906, 120
        %v2115 = vpop.permute.xlu0 %2114
        %2116 = vrot.lane.b32.xlu0 %v907, 120
        %v2117 = vpop.permute.xlu0 %2116
        %2118 = vrot.lane.b32.xlu0 %v908, 120
        %v2119 = vpop.permute.xlu0 %2118
        %2120 = vrot.lane.b32.xlu0 %v909, 120
        %v2121 = vpop.permute.xlu0 %2120
        %2122 = vrot.lane.b32.xlu0 %v910, 120
        %v2123 = vpop.permute.xlu0 %2122
        %2124 = vrot.lane.b32.xlu0 %v911, 120
        %v2125 = vpop.permute.xlu0 %2124
        %2126 = vrot.lane.b32.xlu0 %v912, 120
        %v2127 = vpop.permute.xlu0 %2126
        %2128 = vrot.lane.b32.xlu0 %v913, 120
        %v2129 = vpop.permute.xlu0 %2128
        %2130 = vrot.lane.b32.xlu0 %v914, 120
        %v2131 = vpop.permute.xlu0 %2130
        %2132 = vrot.lane.b32.xlu0 %v915, 120
        %v2133 = vpop.permute.xlu0 %2132
        %2134 = vrot.lane.b32.xlu0 %v916, 120
        %v2135 = vpop.permute.xlu0 %2134
        %2136 = vrot.lane.b32.xlu0 %v917, 120
        %v2137 = vpop.permute.xlu0 %2136
        %2138 = vrot.lane.b32.xlu0 %v918, 120
        %v2139 = vpop.permute.xlu0 %2138
        %2140 = vrot.lane.b32.xlu0 %v919, 120
        %v2141 = vpop.permute.xlu0 %2140
        %2142 = vrot.lane.b32.xlu0 %v920, 120
        %v2143 = vpop.permute.xlu0 %2142
        %2144 = vrot.lane.b32.xlu0 %v921, 120
        %v2145 = vpop.permute.xlu0 %2144
        %2146 = vrot.lane.b32.xlu0 %v922, 120
        %v2147 = vpop.permute.xlu0 %2146
        %v2172 = vsel %vm466, %v899, %v1093
        %v2173 = vsel %vm466, %v900, %v1095
        %v2174 = vsel %vm466, %v901, %v1097
        %v2175 = vsel %vm466, %v902, %v1099
        %v2176 = vsel %vm466, %v903, %v1101
        %v2177 = vsel %vm466, %v904, %v1103
        %v2178 = vsel %vm466, %v905, %v1105
        %v2179 = vsel %vm466, %v906, %v1107
        %v2180 = vsel %vm466, %v907, %v1109
        %v2181 = vsel %vm466, %v908, %v1111
        %v2182 = vsel %vm466, %v909, %v1113
        %v2183 = vsel %vm466, %v910, %v1115
        %v2184 = vsel %vm466, %v911, %v1117
        %v2185 = vsel %vm466, %v912, %v1119
        %v2186 = vsel %vm466, %v913, %v1121
        %v2187 = vsel %vm466, %v914, %v1123
        %v2188 = vsel %vm466, %v915, %v1125
        %v2189 = vsel %vm466, %v916, %v1127
        %v2190 = vsel %vm466, %v917, %v1129
        %v2191 = vsel %vm466, %v918, %v1131
        %v2192 = vsel %vm466, %v919, %v1133
        %v2193 = vsel %vm466, %v920, %v1135
        %v2194 = vsel %vm466, %v921, %v1137
        %v2195 = vsel %vm466, %v922, %v1139
        %vm2196 = vcmask 130048
        %v2197 = vsel %vm2196, %v2172, %v1165
        %v2198 = vsel %vm2196, %v2173, %v1167
        %v2199 = vsel %vm2196, %v2174, %v1169
        %v2200 = vsel %vm2196, %v2175, %v1171
        %v2201 = vsel %vm2196, %v2176, %v1173
        %v2202 = vsel %vm2196, %v2177, %v1175
        %v2203 = vsel %vm2196, %v2178, %v1177
        %v2204 = vsel %vm2196, %v2179, %v1179
        %v2205 = vsel %vm2196, %v2180, %v1181
        %v2206 = vsel %vm2196, %v2181, %v1183
        %v2207 = vsel %vm2196, %v2182, %v1185
        %v2208 = vsel %vm2196, %v2183, %v1187
        %v2209 = vsel %vm2196, %v2184, %v1189
        %v2210 = vsel %vm2196, %v2185, %v1191
        %v2211 = vsel %vm2196, %v2186, %v1193
        %v2212 = vsel %vm2196, %v2187, %v1195
        %v2213 = vsel %vm2196, %v2188, %v1197
        %v2214 = vsel %vm2196, %v2189, %v1199
        %v2215 = vsel %vm2196, %v2190, %v1201
        %v2216 = vsel %vm2196, %v2191, %v1203
        %v2217 = vsel %vm2196, %v2192, %v1205
        %v2218 = vsel %vm2196, %v2193, %v1207
        %v2219 = vsel %vm2196, %v2194, %v1209
        %v2220 = vsel %vm2196, %v2195, %v1211
        %vm2221 = vcmask 195584
        %v2222 = vsel %vm2221, %v2197, %v1237
        %v2223 = vsel %vm2221, %v2198, %v1239
        %v2224 = vsel %vm2221, %v2199, %v1241
        %v2225 = vsel %vm2221, %v2200, %v1243
        %v2226 = vsel %vm2221, %v2201, %v1245
        %v2227 = vsel %vm2221, %v2202, %v1247
        %v2228 = vsel %vm2221, %v2203, %v1249
        %v2229 = vsel %vm2221, %v2204, %v1251
        %v2230 = vsel %vm2221, %v2205, %v1253
        %v2231 = vsel %vm2221, %v2206, %v1255
        %v2232 = vsel %vm2221, %v2207, %v1257
        %v2233 = vsel %vm2221, %v2208, %v1259
        %v2234 = vsel %vm2221, %v2209, %v1261
        %v2235 = vsel %vm2221, %v2210, %v1263
        %v2236 = vsel %vm2221, %v2211, %v1265
        %v2237 = vsel %vm2221, %v2212, %v1267
        %v2238 = vsel %vm2221, %v2213, %v1269
        %v2239 = vsel %vm2221, %v2214, %v1271
        %v2240 = vsel %vm2221, %v2215, %v1273
        %v2241 = vsel %vm2221, %v2216, %v1275
        %v2242 = vsel %vm2221, %v2217, %v1277
        %v2243 = vsel %vm2221, %v2218, %v1279
        %v2244 = vsel %vm2221, %v2219, %v1281
        %v2245 = vsel %vm2221, %v2220, %v1283
        %v2246 = vsel %vm300, %v2222, %v1309
        %v2247 = vsel %vm300, %v2223, %v1311
        %v2248 = vsel %vm300, %v2224, %v1313
        %v2249 = vsel %vm300, %v2225, %v1315
        %v2250 = vsel %vm300, %v2226, %v1317
        %v2251 = vsel %vm300, %v2227, %v1319
        %v2252 = vsel %vm300, %v2228, %v1321
        %v2253 = vsel %vm300, %v2229, %v1323
        %v2254 = vsel %vm300, %v2230, %v1325
        %v2255 = vsel %vm300, %v2231, %v1327
        %v2256 = vsel %vm300, %v2232, %v1329
        %v2257 = vsel %vm300, %v2233, %v1331
        %v2258 = vsel %vm300, %v2234, %v1333
        %v2259 = vsel %vm300, %v2235, %v1335
        %v2260 = vsel %vm300, %v2236, %v1337
        %v2261 = vsel %vm300, %v2237, %v1339
        %v2262 = vsel %vm300, %v2238, %v1341
        %v2263 = vsel %vm300, %v2239, %v1343
        %v2264 = vsel %vm300, %v2240, %v1345
        %v2265 = vsel %vm300, %v2241, %v1347
        %v2266 = vsel %vm300, %v2242, %v1349
        %v2267 = vsel %vm300, %v2243, %v1351
        %v2268 = vsel %vm300, %v2244, %v1353
        %v2269 = vsel %vm300, %v2245, %v1355
        %vm2270 = vcmask 326656
        %v2271 = vsel %vm2270, %v2246, %v1381
        %v2272 = vsel %vm2270, %v2247, %v1383
        %v2273 = vsel %vm2270, %v2248, %v1385
        %v2274 = vsel %vm2270, %v2249, %v1387
        %v2275 = vsel %vm2270, %v2250, %v1389
        %v2276 = vsel %vm2270, %v2251, %v1391
        %v2277 = vsel %vm2270, %v2252, %v1393
        %v2278 = vsel %vm2270, %v2253, %v1395
        %v2279 = vsel %vm2270, %v2254, %v1397
        %v2280 = vsel %vm2270, %v2255, %v1399
        %v2281 = vsel %vm2270, %v2256, %v1401
        %v2282 = vsel %vm2270, %v2257, %v1403
        %v2283 = vsel %vm2270, %v2258, %v1405
        %v2284 = vsel %vm2270, %v2259, %v1407
        %v2285 = vsel %vm2270, %v2260, %v1409
        %v2286 = vsel %vm2270, %v2261, %v1411
        %v2287 = vsel %vm2270, %v2262, %v1413
        %v2288 = vsel %vm2270, %v2263, %v1415
        %v2289 = vsel %vm2270, %v2264, %v1417
        %v2290 = vsel %vm2270, %v2265, %v1419
        %v2291 = vsel %vm2270, %v2266, %v1421
        %v2292 = vsel %vm2270, %v2267, %v1423
        %v2293 = vsel %vm2270, %v2268, %v1425
        %v2294 = vsel %vm2270, %v2269, %v1427
        %vm2295 = vcmask 392192
        %v2296 = vsel %vm2295, %v2271, %v1453
        %v2297 = vsel %vm2295, %v2272, %v1455
        %v2298 = vsel %vm2295, %v2273, %v1457
        %v2299 = vsel %vm2295, %v2274, %v1459
        %v2300 = vsel %vm2295, %v2275, %v1461
        %v2301 = vsel %vm2295, %v2276, %v1463
        %v2302 = vsel %vm2295, %v2277, %v1465
        %v2303 = vsel %vm2295, %v2278, %v1467
        %v2304 = vsel %vm2295, %v2279, %v1469
        %v2305 = vsel %vm2295, %v2280, %v1471
        %v2306 = vsel %vm2295, %v2281, %v1473
        %v2307 = vsel %vm2295, %v2282, %v1475
        %v2308 = vsel %vm2295, %v2283, %v1477
        %v2309 = vsel %vm2295, %v2284, %v1479
        %v2310 = vsel %vm2295, %v2285, %v1481
        %v2311 = vsel %vm2295, %v2286, %v1483
        %v2312 = vsel %vm2295, %v2287, %v1485
        %v2313 = vsel %vm2295, %v2288, %v1487
        %v2314 = vsel %vm2295, %v2289, %v1489
        %v2315 = vsel %vm2295, %v2290, %v1491
        %v2316 = vsel %vm2295, %v2291, %v1493
        %v2317 = vsel %vm2295, %v2292, %v1495
        %v2318 = vsel %vm2295, %v2293, %v1497
        %v2319 = vsel %vm2295, %v2294, %v1499
        %vm2320 = vcmask 457728
        %v2321 = vsel %vm2320, %v2296, %v1525
        %v2322 = vsel %vm2320, %v2297, %v1527
        %v2323 = vsel %vm2320, %v2298, %v1529
        %v2324 = vsel %vm2320, %v2299, %v1531
        %v2325 = vsel %vm2320, %v2300, %v1533
        %v2326 = vsel %vm2320, %v2301, %v1535
        %v2327 = vsel %vm2320, %v2302, %v1537
        %v2328 = vsel %vm2320, %v2303, %v1539
        %v2329 = vsel %vm2320, %v2304, %v1541
        %v2330 = vsel %vm2320, %v2305, %v1543
        %v2331 = vsel %vm2320, %v2306, %v1545
        %v2332 = vsel %vm2320, %v2307, %v1547
        %v2333 = vsel %vm2320, %v2308, %v1549
        %v2334 = vsel %vm2320, %v2309, %v1551
        %v2335 = vsel %vm2320, %v2310, %v1553
        %v2336 = vsel %vm2320, %v2311, %v1555
        %v2337 = vsel %vm2320, %v2312, %v1557
        %v2338 = vsel %vm2320, %v2313, %v1559
        %v2339 = vsel %vm2320, %v2314, %v1561
        %v2340 = vsel %vm2320, %v2315, %v1563
        %v2341 = vsel %vm2320, %v2316, %v1565
        %v2342 = vsel %vm2320, %v2317, %v1567
        %v2343 = vsel %vm2320, %v2318, %v1569
        %v2344 = vsel %vm2320, %v2319, %v1571
        %vm2345 = vcmask 523264
        %v2346 = vsel %vm2345, %v2321, %v1597
        %v2347 = vsel %vm2345, %v2322, %v1599
        %v2348 = vsel %vm2345, %v2323, %v1601
        %v2349 = vsel %vm2345, %v2324, %v1603
        %v2350 = vsel %vm2345, %v2325, %v1605
        %v2351 = vsel %vm2345, %v2326, %v1607
        %v2352 = vsel %vm2345, %v2327, %v1609
        %v2353 = vsel %vm2345, %v2328, %v1611
        %v2354 = vsel %vm2345, %v2329, %v1613
        %v2355 = vsel %vm2345, %v2330, %v1615
        %v2356 = vsel %vm2345, %v2331, %v1617
        %v2357 = vsel %vm2345, %v2332, %v1619
        %v2358 = vsel %vm2345, %v2333, %v1621
        %v2359 = vsel %vm2345, %v2334, %v1623
        %v2360 = vsel %vm2345, %v2335, %v1625
        %v2361 = vsel %vm2345, %v2336, %v1627
        %v2362 = vsel %vm2345, %v2337, %v1629
        %v2363 = vsel %vm2345, %v2338, %v1631
        %v2364 = vsel %vm2345, %v2339, %v1633
        %v2365 = vsel %vm2345, %v2340, %v1635
        %v2366 = vsel %vm2345, %v2341, %v1637
        %v2367 = vsel %vm2345, %v2342, %v1639
        %v2368 = vsel %vm2345, %v2343, %v1641
        %v2369 = vsel %vm2345, %v2344, %v1643
        %vm2370 = vcmask 588800
        %v2371 = vsel %vm2370, %v2346, %v1669
        %v2372 = vsel %vm2370, %v2347, %v1671
        %v2373 = vsel %vm2370, %v2348, %v1673
        %v2374 = vsel %vm2370, %v2349, %v1675
        %v2375 = vsel %vm2370, %v2350, %v1677
        %v2376 = vsel %vm2370, %v2351, %v1679
        %v2377 = vsel %vm2370, %v2352, %v1681
        %v2378 = vsel %vm2370, %v2353, %v1683
        %v2379 = vsel %vm2370, %v2354, %v1685
        %v2380 = vsel %vm2370, %v2355, %v1687
        %v2381 = vsel %vm2370, %v2356, %v1689
        %v2382 = vsel %vm2370, %v2357, %v1691
        %v2383 = vsel %vm2370, %v2358, %v1693
        %v2384 = vsel %vm2370, %v2359, %v1695
        %v2385 = vsel %vm2370, %v2360, %v1697
        %v2386 = vsel %vm2370, %v2361, %v1699
        %v2387 = vsel %vm2370, %v2362, %v1701
        %v2388 = vsel %vm2370, %v2363, %v1703
        %v2389 = vsel %vm2370, %v2364, %v1705
        %v2390 = vsel %vm2370, %v2365, %v1707
        %v2391 = vsel %vm2370, %v2366, %v1709
        %v2392 = vsel %vm2370, %v2367, %v1711
        %v2393 = vsel %vm2370, %v2368, %v1713
        %v2394 = vsel %vm2370, %v2369, %v1715
        %vm2395 = vcmask 654336
        %v2396 = vsel %vm2395, %v2371, %v1741
        %v2397 = vsel %vm2395, %v2372, %v1743
        %v2398 = vsel %vm2395, %v2373, %v1745
        %v2399 = vsel %vm2395, %v2374, %v1747
        %v2400 = vsel %vm2395, %v2375, %v1749
        %v2401 = vsel %vm2395, %v2376, %v1751
        %v2402 = vsel %vm2395, %v2377, %v1753
        %v2403 = vsel %vm2395, %v2378, %v1755
        %v2404 = vsel %vm2395, %v2379, %v1757
        %v2405 = vsel %vm2395, %v2380, %v1759
        %v2406 = vsel %vm2395, %v2381, %v1761
        %v2407 = vsel %vm2395, %v2382, %v1763
        %v2408 = vsel %vm2395, %v2383, %v1765
        %v2409 = vsel %vm2395, %v2384, %v1767
        %v2410 = vsel %vm2395, %v2385, %v1769
        %v2411 = vsel %vm2395, %v2386, %v1771
        %v2412 = vsel %vm2395, %v2387, %v1773
        %v2413 = vsel %vm2395, %v2388, %v1775
        %v2414 = vsel %vm2395, %v2389, %v1777
        %v2415 = vsel %vm2395, %v2390, %v1779
        %v2416 = vsel %vm2395, %v2391, %v1781
        %v2417 = vsel %vm2395, %v2392, %v1783
        %v2418 = vsel %vm2395, %v2393, %v1785
        %v2419 = vsel %vm2395, %v2394, %v1787
        %vm2420 = vcmask 719872
        %v2421 = vsel %vm2420, %v2396, %v1813
        %v2422 = vsel %vm2420, %v2397, %v1815
        %v2423 = vsel %vm2420, %v2398, %v1817
        %v2424 = vsel %vm2420, %v2399, %v1819
        %v2425 = vsel %vm2420, %v2400, %v1821
        %v2426 = vsel %vm2420, %v2401, %v1823
        %v2427 = vsel %vm2420, %v2402, %v1825
        %v2428 = vsel %vm2420, %v2403, %v1827
        %v2429 = vsel %vm2420, %v2404, %v1829
        %v2430 = vsel %vm2420, %v2405, %v1831
        %v2431 = vsel %vm2420, %v2406, %v1833
        %v2432 = vsel %vm2420, %v2407, %v1835
        %v2433 = vsel %vm2420, %v2408, %v1837
        %v2434 = vsel %vm2420, %v2409, %v1839
        %v2435 = vsel %vm2420, %v2410, %v1841
        %v2436 = vsel %vm2420, %v2411, %v1843
        %v2437 = vsel %vm2420, %v2412, %v1845
        %v2438 = vsel %vm2420, %v2413, %v1847
        %v2439 = vsel %vm2420, %v2414, %v1849
        %v2440 = vsel %vm2420, %v2415, %v1851
        %v2441 = vsel %vm2420, %v2416, %v1853
        %v2442 = vsel %vm2420, %v2417, %v1855
        %v2443 = vsel %vm2420, %v2418, %v1857
        %v2444 = vsel %vm2420, %v2419, %v1859
        %vm2445 = vcmask 785408
        %v2446 = vsel %vm2445, %v2421, %v1885
        %v2447 = vsel %vm2445, %v2422, %v1887
        %v2448 = vsel %vm2445, %v2423, %v1889
        %v2449 = vsel %vm2445, %v2424, %v1891
        %v2450 = vsel %vm2445, %v2425, %v1893
        %v2451 = vsel %vm2445, %v2426, %v1895
        %v2452 = vsel %vm2445, %v2427, %v1897
        %v2453 = vsel %vm2445, %v2428, %v1899
        %v2454 = vsel %vm2445, %v2429, %v1901
        %v2455 = vsel %vm2445, %v2430, %v1903
        %v2456 = vsel %vm2445, %v2431, %v1905
        %v2457 = vsel %vm2445, %v2432, %v1907
        %v2458 = vsel %vm2445, %v2433, %v1909
        %v2459 = vsel %vm2445, %v2434, %v1911
        %v2460 = vsel %vm2445, %v2435, %v1913
        %v2461 = vsel %vm2445, %v2436, %v1915
        %v2462 = vsel %vm2445, %v2437, %v1917
        %v2463 = vsel %vm2445, %v2438, %v1919
        %v2464 = vsel %vm2445, %v2439, %v1921
        %v2465 = vsel %vm2445, %v2440, %v1923
        %v2466 = vsel %vm2445, %v2441, %v1925
        %v2467 = vsel %vm2445, %v2442, %v1927
        %v2468 = vsel %vm2445, %v2443, %v1929
        %v2469 = vsel %vm2445, %v2444, %v1931
        %vm2470 = vcmask 850944
        %v2471 = vsel %vm2470, %v2446, %v1957
        %v2472 = vsel %vm2470, %v2447, %v1959
        %v2473 = vsel %vm2470, %v2448, %v1961
        %v2474 = vsel %vm2470, %v2449, %v1963
        %v2475 = vsel %vm2470, %v2450, %v1965
        %v2476 = vsel %vm2470, %v2451, %v1967
        %v2477 = vsel %vm2470, %v2452, %v1969
        %v2478 = vsel %vm2470, %v2453, %v1971
        %v2479 = vsel %vm2470, %v2454, %v1973
        %v2480 = vsel %vm2470, %v2455, %v1975
        %v2481 = vsel %vm2470, %v2456, %v1977
        %v2482 = vsel %vm2470, %v2457, %v1979
        %v2483 = vsel %vm2470, %v2458, %v1981
        %v2484 = vsel %vm2470, %v2459, %v1983
        %v2485 = vsel %vm2470, %v2460, %v1985
        %v2486 = vsel %vm2470, %v2461, %v1987
        %v2487 = vsel %vm2470, %v2462, %v1989
        %v2488 = vsel %vm2470, %v2463, %v1991
        %v2489 = vsel %vm2470, %v2464, %v1993
        %v2490 = vsel %vm2470, %v2465, %v1995
        %v2491 = vsel %vm2470, %v2466, %v1997
        %v2492 = vsel %vm2470, %v2467, %v1999
        %v2493 = vsel %vm2470, %v2468, %v2001
        %v2494 = vsel %vm2470, %v2469, %v2003
        %vm2495 = vcmask 916480
        %v2496 = vsel %vm2495, %v2471, %v2029
        %v2497 = vsel %vm2495, %v2472, %v2031
        %v2498 = vsel %vm2495, %v2473, %v2033
        %v2499 = vsel %vm2495, %v2474, %v2035
        %v2500 = vsel %vm2495, %v2475, %v2037
        %v2501 = vsel %vm2495, %v2476, %v2039
        %v2502 = vsel %vm2495, %v2477, %v2041
        %v2503 = vsel %vm2495, %v2478, %v2043
        %v2504 = vsel %vm2495, %v2479, %v2045
        %v2505 = vsel %vm2495, %v2480, %v2047
        %v2506 = vsel %vm2495, %v2481, %v2049
        %v2507 = vsel %vm2495, %v2482, %v2051
        %v2508 = vsel %vm2495, %v2483, %v2053
        %v2509 = vsel %vm2495, %v2484, %v2055
        %v2510 = vsel %vm2495, %v2485, %v2057
        %v2511 = vsel %vm2495, %v2486, %v2059
        %v2512 = vsel %vm2495, %v2487, %v2061
        %v2513 = vsel %vm2495, %v2488, %v2063
        %v2514 = vsel %vm2495, %v2489, %v2065
        %v2515 = vsel %vm2495, %v2490, %v2067
        %v2516 = vsel %vm2495, %v2491, %v2069
        %v2517 = vsel %vm2495, %v2492, %v2071
        %v2518 = vsel %vm2495, %v2493, %v2073
        %v2519 = vsel %vm2495, %v2494, %v2075
        %vm2520 = vcmask 982016
        %v2521 = vsel %vm2520, %v2496, %v2101
        %v2522 = vsel %vm2520, %v2497, %v2103
        %v2523 = vsel %vm2520, %v2498, %v2105
        %v2524 = vsel %vm2520, %v2499, %v2107
        %v2525 = vsel %vm2520, %v2500, %v2109
        %v2526 = vsel %vm2520, %v2501, %v2111
        %v2527 = vsel %vm2520, %v2502, %v2113
        %v2528 = vsel %vm2520, %v2503, %v2115
        %v2529 = vsel %vm2520, %v2504, %v2117
        %v2530 = vsel %vm2520, %v2505, %v2119
        %v2531 = vsel %vm2520, %v2506, %v2121
        %v2532 = vsel %vm2520, %v2507, %v2123
        %v2533 = vsel %vm2520, %v2508, %v2125
        %v2534 = vsel %vm2520, %v2509, %v2127
        %v2535 = vsel %vm2520, %v2510, %v2129
        %v2536 = vsel %vm2520, %v2511, %v2131
        %v2537 = vsel %vm2520, %v2512, %v2133
        %v2538 = vsel %vm2520, %v2513, %v2135
        %v2539 = vsel %vm2520, %v2514, %v2137
        %v2540 = vsel %vm2520, %v2515, %v2139
        %v2541 = vsel %vm2520, %v2516, %v2141
        %v2542 = vsel %vm2520, %v2517, %v2143
        %v2543 = vsel %vm2520, %v2518, %v2145
        %v2544 = vsel %vm2520, %v2519, %v2147
        %v2545 = vmul.f32 %v2521, %v974
        %v2546 = vmul.f32 %v2522, %v977
        %v2547 = vmul.f32 %v2523, %v982
        %v2548 = vmul.f32 %v2524, %v985
        %v2549 = vmul.f32 %v2525, %v990
        %v2550 = vmul.f32 %v2526, %v993
        %v2551 = vmul.f32 %v2527, %v998
        %v2552 = vmul.f32 %v2528, %v1001
        %v2553 = vmul.f32 %v2529, %v1006
        %v2554 = vmul.f32 %v2530, %v1009
        %v2555 = vmul.f32 %v2531, %v1014
        %v2556 = vmul.f32 %v2532, %v1017
        %v2557 = vmul.f32 %v2533, %v1022
        %v2558 = vmul.f32 %v2534, %v1025
        %v2559 = vmul.f32 %v2535, %v1030
        %v2560 = vmul.f32 %v2536, %v1033
        %v2561 = vmul.f32 %v2537, %v1038
        %v2562 = vmul.f32 %v2538, %v1041
        %v2563 = vmul.f32 %v2539, %v1046
        %v2564 = vmul.f32 %v2540, %v1049
        %v2565 = vmul.f32 %v2541, %v1054
        %v2566 = vmul.f32 %v2542, %v1057
        %v2567 = vmul.f32 %v2543, %v1062
        %v2568 = vmul.f32 %v2544, %v1065
        %v2569 = vrot.slane %v2545, 4
        %v2570 = vadd.f32 %v2545, %v2569
        %v2571 = vrot.slane %v2570, 2
        %v2572 = vadd.f32 %v2570, %v2571
        %v2573 = vrot.slane %v2572, 1
        %v2574 = vadd.f32 %v2572, %v2573
        %v2575 = vrot.slane %v2546, 4
        %v2576 = vadd.f32 %v2546, %v2575
        %v2577 = vrot.slane %v2576, 2
        %v2578 = vadd.f32 %v2576, %v2577
        %v2579 = vrot.slane %v2578, 1
        %v2580 = vadd.f32 %v2578, %v2579
        %v2581 = vrot.slane %v2547, 4
        %v2582 = vadd.f32 %v2547, %v2581
        %v2583 = vrot.slane %v2582, 2
        %v2584 = vadd.f32 %v2582, %v2583
        %v2585 = vrot.slane %v2584, 1
        %v2586 = vadd.f32 %v2584, %v2585
        %v2587 = vrot.slane %v2548, 4
        %v2588 = vadd.f32 %v2548, %v2587
        %v2589 = vrot.slane %v2588, 2
        %v2590 = vadd.f32 %v2588, %v2589
        %v2591 = vrot.slane %v2590, 1
        %v2592 = vadd.f32 %v2590, %v2591
        %v2593 = vrot.slane %v2549, 4
        %v2594 = vadd.f32 %v2549, %v2593
        %v2595 = vrot.slane %v2594, 2
        %v2596 = vadd.f32 %v2594, %v2595
        %v2597 = vrot.slane %v2596, 1
        %v2598 = vadd.f32 %v2596, %v2597
        %v2599 = vrot.slane %v2550, 4
        %v2600 = vadd.f32 %v2550, %v2599
        %v2601 = vrot.slane %v2600, 2
        %v2602 = vadd.f32 %v2600, %v2601
        %v2603 = vrot.slane %v2602, 1
        %v2604 = vadd.f32 %v2602, %v2603
        %v2605 = vrot.slane %v2551, 4
        %v2606 = vadd.f32 %v2551, %v2605
        %v2607 = vrot.slane %v2606, 2
        %v2608 = vadd.f32 %v2606, %v2607
        %v2609 = vrot.slane %v2608, 1
        %v2610 = vadd.f32 %v2608, %v2609
        %v2611 = vrot.slane %v2552, 4
        %v2612 = vadd.f32 %v2552, %v2611
        %v2613 = vrot.slane %v2612, 2
        %v2614 = vadd.f32 %v2612, %v2613
        %v2615 = vrot.slane %v2614, 1
        %v2616 = vadd.f32 %v2614, %v2615
        %v2617 = vrot.slane %v2553, 4
        %v2618 = vadd.f32 %v2553, %v2617
        %v2619 = vrot.slane %v2618, 2
        %v2620 = vadd.f32 %v2618, %v2619
        %v2621 = vrot.slane %v2620, 1
        %v2622 = vadd.f32 %v2620, %v2621
        %v2623 = vrot.slane %v2554, 4
        %v2624 = vadd.f32 %v2554, %v2623
        %v2625 = vrot.slane %v2624, 2
        %v2626 = vadd.f32 %v2624, %v2625
        %v2627 = vrot.slane %v2626, 1
        %v2628 = vadd.f32 %v2626, %v2627
        %v2629 = vrot.slane %v2555, 4
        %v2630 = vadd.f32 %v2555, %v2629
        %v2631 = vrot.slane %v2630, 2
        %v2632 = vadd.f32 %v2630, %v2631
        %v2633 = vrot.slane %v2632, 1
        %v2634 = vadd.f32 %v2632, %v2633
        %v2635 = vrot.slane %v2556, 4
        %v2636 = vadd.f32 %v2556, %v2635
        %v2637 = vrot.slane %v2636, 2
        %v2638 = vadd.f32 %v2636, %v2637
        %v2639 = vrot.slane %v2638, 1
        %v2640 = vadd.f32 %v2638, %v2639
        %v2641 = vrot.slane %v2557, 4
        %v2642 = vadd.f32 %v2557, %v2641
        %v2643 = vrot.slane %v2642, 2
        %v2644 = vadd.f32 %v2642, %v2643
        %v2645 = vrot.slane %v2644, 1
        %v2646 = vadd.f32 %v2644, %v2645
        %v2647 = vrot.slane %v2558, 4
        %v2648 = vadd.f32 %v2558, %v2647
        %v2649 = vrot.slane %v2648, 2
        %v2650 = vadd.f32 %v2648, %v2649
        %v2651 = vrot.slane %v2650, 1
        %v2652 = vadd.f32 %v2650, %v2651
        %v2653 = vrot.slane %v2559, 4
        %v2654 = vadd.f32 %v2559, %v2653
        %v2655 = vrot.slane %v2654, 2
        %v2656 = vadd.f32 %v2654, %v2655
        %v2657 = vrot.slane %v2656, 1
        %v2658 = vadd.f32 %v2656, %v2657
        %v2659 = vrot.slane %v2560, 4
        %v2660 = vadd.f32 %v2560, %v2659
        %v2661 = vrot.slane %v2660, 2
        %v2662 = vadd.f32 %v2660, %v2661
        %v2663 = vrot.slane %v2662, 1
        %v2664 = vadd.f32 %v2662, %v2663
        %v2665 = vrot.slane %v2561, 4
        %v2666 = vadd.f32 %v2561, %v2665
        %v2667 = vrot.slane %v2666, 2
        %v2668 = vadd.f32 %v2666, %v2667
        %v2669 = vrot.slane %v2668, 1
        %v2670 = vadd.f32 %v2668, %v2669
        %v2671 = vrot.slane %v2562, 4
        %v2672 = vadd.f32 %v2562, %v2671
        %v2673 = vrot.slane %v2672, 2
        %v2674 = vadd.f32 %v2672, %v2673
        %v2675 = vrot.slane %v2674, 1
        %v2676 = vadd.f32 %v2674, %v2675
        %v2677 = vrot.slane %v2563, 4
        %v2678 = vadd.f32 %v2563, %v2677
        %v2679 = vrot.slane %v2678, 2
        %v2680 = vadd.f32 %v2678, %v2679
        %v2681 = vrot.slane %v2680, 1
        %v2682 = vadd.f32 %v2680, %v2681
        %v2683 = vrot.slane %v2564, 4
        %v2684 = vadd.f32 %v2564, %v2683
        %v2685 = vrot.slane %v2684, 2
        %v2686 = vadd.f32 %v2684, %v2685
        %v2687 = vrot.slane %v2686, 1
        %v2688 = vadd.f32 %v2686, %v2687
        %v2689 = vrot.slane %v2565, 4
        %v2690 = vadd.f32 %v2565, %v2689
        %v2691 = vrot.slane %v2690, 2
        %v2692 = vadd.f32 %v2690, %v2691
        %v2693 = vrot.slane %v2692, 1
        %v2694 = vadd.f32 %v2692, %v2693
        %v2695 = vrot.slane %v2566, 4
        %v2696 = vadd.f32 %v2566, %v2695
        %v2697 = vrot.slane %v2696, 2
        %v2698 = vadd.f32 %v2696, %v2697
        %v2699 = vrot.slane %v2698, 1
        %v2700 = vadd.f32 %v2698, %v2699
        %v2701 = vrot.slane %v2567, 4
        %v2702 = vadd.f32 %v2567, %v2701
        %v2703 = vrot.slane %v2702, 2
        %v2704 = vadd.f32 %v2702, %v2703
        %v2705 = vrot.slane %v2704, 1
        %v2706 = vadd.f32 %v2704, %v2705
        %v2707 = vrot.slane %v2568, 4
        %v2708 = vadd.f32 %v2568, %v2707
        %v2709 = vrot.slane %v2708, 2
        %v2710 = vadd.f32 %v2708, %v2709
        %v2711 = vrot.slane %v2710, 1
        %v2712 = vadd.f32 %v2710, %v2711
        %v2713 = vpack.c.bf16 %v2574, %v2574
        %v2714 = vpack.c.bf16 %v2580, %v2580
        %v2715 = vpack.c.bf16 %v2586, %v2586
        %v2716 = vpack.c.bf16 %v2592, %v2592
        %v2717 = vpack.c.bf16 %v2598, %v2598
        %v2718 = vpack.c.bf16 %v2604, %v2604
        %v2719 = vpack.c.bf16 %v2610, %v2610
        %v2720 = vpack.c.bf16 %v2616, %v2616
        %v2721 = vpack.c.bf16 %v2622, %v2622
        %v2722 = vpack.c.bf16 %v2628, %v2628
        %v2723 = vpack.c.bf16 %v2634, %v2634
        %v2724 = vpack.c.bf16 %v2640, %v2640
        %v2725 = vpack.c.bf16 %v2646, %v2646
        %v2726 = vpack.c.bf16 %v2652, %v2652
        %v2727 = vpack.c.bf16 %v2658, %v2658
        %v2728 = vpack.c.bf16 %v2664, %v2664
        %v2729 = vpack.c.bf16 %v2670, %v2670
        %v2730 = vpack.c.bf16 %v2676, %v2676
        %v2731 = vpack.c.bf16 %v2682, %v2682
        %v2732 = vpack.c.bf16 %v2688, %v2688
        %v2733 = vpack.c.bf16 %v2694, %v2694
        %v2734 = vpack.c.bf16 %v2700, %v2700
        %v2735 = vpack.c.bf16 %v2706, %v2706
        %v2736 = vpack.c.bf16 %v2712, %v2712
        %v2737 = vlaneseq
        %v2738 = vshrl.u32 %v2737, 7
        %v2739 = vsub.s32 0, %v2738
        %v2740 = vrot.slane %v223, %v2739
        %v2765 = vunpack.c.l.b16 %v2713
        %v2766 = vunpack.c.l.b16 %v2714
        %v2767 = vunpack.c.l.b16 %v2715
        %v2768 = vunpack.c.l.b16 %v2716
        %v2769 = vunpack.c.l.b16 %v2717
        %v2770 = vunpack.c.l.b16 %v2718
        %v2771 = vunpack.c.l.b16 %v2719
        %v2772 = vunpack.c.l.b16 %v2720
        %v2773 = vunpack.c.l.b16 %v2721
        %v2774 = vunpack.c.l.b16 %v2722
        %v2775 = vunpack.c.l.b16 %v2723
        %v2776 = vunpack.c.l.b16 %v2724
        %v2777 = vunpack.c.l.b16 %v2725
        %v2778 = vunpack.c.l.b16 %v2726
        %v2779 = vunpack.c.l.b16 %v2727
        %v2780 = vunpack.c.l.b16 %v2728
        %v2781 = vunpack.c.l.b16 %v2729
        %v2782 = vunpack.c.l.b16 %v2730
        %v2783 = vunpack.c.l.b16 %v2731
        %v2784 = vunpack.c.l.b16 %v2732
        %v2785 = vunpack.c.l.b16 %v2733
        %v2786 = vunpack.c.l.b16 %v2734
        %v2787 = vunpack.c.l.b16 %v2735
        %v2788 = vunpack.c.l.b16 %v2736
        %vm2789 = vcmask 1041409
        %v2790 = vsel %vm2789, %v2766, %v2765
        %vm2791 = vcmask 1042434
        %v2792 = vsel %vm2791, %v2767, %v2790
        %vm2793 = vcmask 1043459
        %v2794 = vsel %vm2793, %v2768, %v2792
        %vm2795 = vcmask 1044484
        %v2796 = vsel %vm2795, %v2769, %v2794
        %vm2797 = vcmask 1045509
        %v2798 = vsel %vm2797, %v2770, %v2796
        %vm2799 = vcmask 1046534
        %v2800 = vsel %vm2799, %v2771, %v2798
        %vm2801 = vcmask 1047559
        %v2802 = vsel %vm2801, %v2772, %v2800
        %v2803 = vsel %vm2789, %v2774, %v2773
        %v2804 = vsel %vm2791, %v2775, %v2803
        %v2805 = vsel %vm2793, %v2776, %v2804
        %v2806 = vsel %vm2795, %v2777, %v2805
        %v2807 = vsel %vm2797, %v2778, %v2806
        %v2808 = vsel %vm2799, %v2779, %v2807
        %v2809 = vsel %vm2801, %v2780, %v2808
        %v2810 = vsel %vm2789, %v2782, %v2781
        %v2811 = vsel %vm2791, %v2783, %v2810
        %v2812 = vsel %vm2793, %v2784, %v2811
        %v2813 = vsel %vm2795, %v2785, %v2812
        %v2814 = vsel %vm2797, %v2786, %v2813
        %v2815 = vsel %vm2799, %v2787, %v2814
        %v2816 = vsel %vm2801, %v2788, %v2815
        %v2817 = vpack.c.b16 %v2809, %v2802
        %v2818 = vpack.c.b16 %v2816, %v2816
        %v2837 = vunpack.c.l.b16 %v205
        %v2838 = vunpack.c.l.b16 %v206
        %v2839 = vunpack.c.l.b16 %v207
        %v2840 = vunpack.c.l.b16 %v208
        %v2841 = vunpack.c.l.b16 %v209
        %v2842 = vunpack.c.l.b16 %v210
        %v2843 = vunpack.c.l.b16 %v211
        %v2844 = vunpack.c.l.b16 %v212
        %v2845 = vunpack.c.l.b16 %v213
        %v2846 = vunpack.c.l.b16 %v214
        %v2847 = vunpack.c.l.b16 %v215
        %v2848 = vunpack.c.l.b16 %v216
        %v2849 = vunpack.c.l.b16 %v217
        %v2850 = vunpack.c.l.b16 %v218
        %v2851 = vunpack.c.l.b16 %v219
        %v2852 = vunpack.c.l.b16 %v220
        %v2853 = vpack.c.b16 %v2838, %v2837
        %v2854 = vpack.c.b16 %v2840, %v2839
        %v2855 = vpack.c.b16 %v2842, %v2841
        %v2856 = vpack.c.b16 %v2844, %v2843
        %v2857 = vpack.c.b16 %v2846, %v2845
        %v2858 = vpack.c.b16 %v2848, %v2847
        %v2859 = vpack.c.b16 %v2850, %v2849
        %v2860 = vpack.c.b16 %v2852, %v2851
        %2869 = vmatprep.subr.bf16.mxu0 0
        %2870 = vmatpush1.bf16.msra.mxu0 %v2853
        %2871 = vmatprep.subr.bf16.mxu0 0
        %2872 = vmatpush1.bf16.msra.mxu0 %v2854
        %2873 = vmatprep.subr.bf16.mxu0 0
        %2874 = vmatpush1.bf16.msra.mxu0 %v2855
        %2875 = vmatprep.subr.bf16.mxu0 0
        %2876 = vmatpush1.bf16.msra.mxu0 %v2856
        %2877 = vmatprep.subr.bf16.mxu0 0
        %2878 = vmatpush1.bf16.msra.mxu0 %v2857
        %2879 = vmatprep.subr.bf16.mxu0 0
        %2880 = vmatpush1.bf16.msra.mxu0 %v2858
        %2881 = vmatprep.subr.bf16.mxu0 0
        %2882 = vmatpush1.bf16.msra.mxu0 %v2859
        %2883 = vmatprep.subr.bf16.mxu0 0
        %2884 = vmatpush1.bf16.msra.mxu0 %v2860
        %2885 = vmatprep.subr.bf16.mxu0 0
        %2886 = vmatpush1.bf16.msra.mxu0 0
        %2887 = vmatprep.subr.bf16.mxu0 0
        %2888 = vmatpush1.bf16.msra.mxu0 0
        %2889 = vmatprep.subr.bf16.mxu0 0
        %2890 = vmatpush1.bf16.msra.mxu0 0
        %2891 = vmatprep.subr.bf16.mxu0 0
        %2892 = vmatpush1.bf16.msra.mxu0 0
        %2893 = vmatprep.subr.bf16.mxu0 0
        %2894 = vmatpush1.bf16.msra.mxu0 0
        %2895 = vmatprep.subr.bf16.mxu0 0
        %2896 = vmatpush1.bf16.msra.mxu0 0
        %2897 = vmatprep.subr.bf16.mxu0 0
        %2898 = vmatpush1.bf16.msra.mxu0 0
        %2899 = vmatprep.subr.bf16.mxu0 0
        %2900 = vmatpush1.bf16.msra.mxu0 0
        %2901 = vmatprep.mubr.bf16.mxu0 0
        %2902 = vmatmul.mubr.bf16.gmra.mrb[0].mxu0 %v2817
        %v2903 = vpop.f32.mrb[0].mxu0
        %v2904 = vadd.f32 %v2740, %v2903
        %v2905 = vpop.f32.mrb[0].mxu0
        %v2906 = vpop.f32.mrb[0].mxu0
        %v2907 = vadd.f32 %v2740, %v2906
        %v2908 = vpop.f32.mrb[0].mxu0
        %2909 = vmatprep.mubr.bf16.mxu0 0
        %2910 = vmatmul.mubr.bf16.gmra.mrb[0].mxu0 %v2818
        %v2911 = vpop.f32.mrb[0].mxu0
        %v2912 = vadd.f32 %v2740, %v2911
        %v2913 = vpop.f32.mrb[0].mxu0
        %v2914 = vpop.f32.mrb[0].mxu0
        %v2915 = vpop.f32.mrb[0].mxu0
        %2916 = vdwg.mxu0
        %2917 = vst [vmem:[%s164] sm:$0xff] %v2904
        %2918 = vst [vmem:[%s164 + $0x8] sm:$0xff] %v2907
        %2919 = vst [vmem:[%s164 + $0x10] sm:$0xff] %v2912
        %s2920 = sand.u32 %s93, 1
        %s2921 = scalar_lea.sflag [#allocation3], %s2920
        %s2922 = sand.u32 %s93, 1
        %s2923 = smul.addr %s2922, 24
        %s2924 = scalar_lea.vmem [#allocation2], %s2923
        // Predicated region
        $region33: #{tpu_custom_call.1} parent=31 // pred_check
          %p2925 = pneg %p103
        $region34: #{tpu_custom_call.1} parent=31 // pred_check_branch
          %2927 = sbr.rel (%p2925) target = $region36
        $region35: #{tpu_custom_call.1} parent=31 // pred_region
          %s2928 = smul.u32 3, %s17
          %s2930 = ssub.s32 384, 384
          %2931 = vsyncadd %s2921, %s2930
          %s2932 = smul.addr %s2928, 128
          %s2933 = scalar_lea.hbm %s3, %s2932
          %s2934 = sshll.u32 %s2924, 4
          %s2935 = int_to_ptr.vmem [resolvable:$true] %s2934
          %2940 = dma.vmem_to_hbm [thread:$0]  %s2935, 384, %s2933, %s2921, 128, 128, 8
        $region36: #{tpu_custom_call.1} parent=31 // pred_fallthru
          _
      $region32: #{tpu_custom_call.1} parent=5 // pred_fallthru
        _
      %p2941 = scmp.le.s32.totalorder 2, %s12
      // Predicated region
      $region37: #{tpu_custom_call.1} parent=5 // pred_check
        %p2942 = pneg %p2941
      $region38: #{tpu_custom_call.1} parent=5 // pred_check_branch
        %2944 = sbr.rel (%p2942) target = $region40
      $region39: #{tpu_custom_call.1} parent=5 // pred_region
        %s2945 = ssub.s32 %s12, 2
        // Predicated region
        $region41: #{tpu_custom_call.1} parent=39 // pred_check
          %p2946 = pneg %p109
        $region42: #{tpu_custom_call.1} parent=39 // pred_check_branch
          %2948 = sbr.rel (%p2946) target = $region44
        $region43: #{tpu_custom_call.1} parent=39 // pred_region
          %s2949 = sand.u32 %s94, 1
          %s2950 = scalar_lea.sflag [#allocation3], %s2949
          %s2951 = sand.u32 %s94, 1
          %s2952 = smul.addr %s2951, 24
          %s2953 = scalar_lea.vmem [#allocation2], %s2952
          %2954 = dma.done %s2950, 384
        $region44: #{tpu_custom_call.1} parent=39 // pred_fallthru
          _
      $region40: #{tpu_custom_call.1} parent=5 // pred_fallthru
        _
    $region6: #{tpu_custom_call.1} parent=1 // loop_footer
      %s16 = sadd.s32 1, %s12
    $region7: #{tpu_custom_call.1} parent=1 // loop_footer_branch
      %11 = sbr.rel target = $region3
    $region8: #{tpu_custom_call.1} parent=1 // loop_exit
      _
    %2955 = vsyncpa [#allocation3], 1
    %s2956 = scalar_lea.sflag [#allocation3], 1
    %2957 = vsyncpa %s2956, 1

</llo_original>
